<compile_context>
chip_gen: v7x
topology: tpu7x:2x2x1
jax: 0.10.0
libtpu: 0.0.40
codegen_flags: <defaults>
</compile_context>

<pallas_src>
import numpy as np
import jax
import jax.numpy as jnp
from jax import lax
from jax.experimental import pallas as pl
from jax.experimental.pallas import tpu as pltpu

# ---- ScConv hyper-parameters (module __init__ defaults) ----
OP_CHANNEL = 16
GROUP_NUM = 4
GATE_T = 0.5
ALPHA = 0.5
SQUEEZE = 2
GROUP_SIZE = 2          # groups of the GWC conv
GK = 3                  # group_kernel_size
EPS = 1e-10

N, C, H, W = 2, OP_CHANNEL, 16, 16
HW = H * W
UP = int(ALPHA * C)          # 8
LOW = C - UP                 # 8
UPS = UP // SQUEEZE          # 4
LOWS = LOW // SQUEEZE        # 4
NTAP = GK * GK
SQC = UPS + LOWS             # 8 rows of the squeezed slab
KCOMB = NTAP * SQC + SQC     # 80 : stacked-RHS contraction size


def scconv_kernel(x_ref, gnw_ref, gnb_ref, wg_ref, pmat_ref, wsq_ref,
                  wcru_ref, bcru_ref, mask_ref, o_ref):
    f32 = jnp.float32
    x = x_ref[0].astype(f32)                     # (C, HW)
    gnw = gnw_ref[...].astype(f32)               # (C, 1)
    gnb = gnb_ref[...].astype(f32)               # (C, 1)
    w_gamma = wg_ref[...].astype(f32)            # (C, 1) precomputed host-side

    # ---------------- SRU: GroupBatchnorm2d ----------------
    # lane-reduce first, then tiny (C,C)x(C,1) group-membership matmuls.
    n_elem = float((C // GROUP_NUM) * HW)
    s1 = jnp.sum(x, axis=1, keepdims=True)                              # (C, 1)
    s2 = jnp.sum(x * x, axis=1, keepdims=True)                          # (C, 1)
    gsum = jnp.dot(pmat_ref[...], s1, preferred_element_type=f32)       # (C, 1)
    gsumsq = jnp.dot(pmat_ref[...], s2, preferred_element_type=f32)     # (C, 1)
    mean = gsum * (1.0 / n_elem)
    var = jnp.maximum((gsumsq - n_elem * mean * mean) / (n_elem - 1.0), 0.0)
    inv_std = 1.0 / (jnp.sqrt(var) + EPS)        # (C,1) — exact, tiny (unbiased std)
    scale = gnw * inv_std                        # fold affine weight into the scale
    shift = gnb - mean * scale
    gn_x = x * scale + shift                     # (C, HW): one mul + one add per elem

    # ---------------- SRU: gating + reconstruct ----------------
    rew = jax.nn.sigmoid(gn_x * w_gamma)
    info = rew >= GATE_T
    x1 = jnp.where(info, gn_x, 0.0)
    x2 = jnp.where(info, 0.0, gn_x)
    half = C // 2
    # cross-half add == torch reconstruct; halves are sublane-tile aligned (8 rows)
    sr = x1 + jnp.concatenate([x2[half:], x2[:half]], axis=0)           # (C, HW)

    # ---------------- CRU: fused squeeze (both 1x1 convs, block-diag) ----------------
    sq = jnp.dot(wsq_ref[...], sr, preferred_element_type=f32)          # (8, HW): [up_s; low_s]

    # ---------------- CRU: GWC + PWC1 + PWC2 + identity as ONE matmul ----------------
    # Build a (80, HW) stacked RHS: 9 lane-rolled + edge-masked copies of sq
    # (one per 3x3 tap) followed by sq itself (for the 1x1 paths).
    pieces = []
    k = 0
    for kh in range(GK):
        for kw in range(GK):
            dh, dw = kh - GK // 2, kw - GK // 2
            off = dh * W + dw
            if off == 0:
                pieces.append(sq)                                       # center tap: no shift/mask
            else:
                rolled = pltpu.roll(sq, (-off) % HW, axis=1)            # XLU lane rotation
                pieces.append(rolled * mask_ref[k])                     # zero wrapped rows/cols
            k += 1
    pieces.append(sq)
    stacked = jnp.concatenate(pieces, axis=0)                           # (80, HW), 8-row aligned
    out = jnp.dot(wcru_ref[...], stacked, preferred_element_type=f32)   # (2C, HW)
    out = out + bcru_ref[...].astype(f32)

    # ---------------- channel softmax over GAP, reweight, fold halves ----------------
    avg = jnp.mean(out, axis=1, keepdims=True)                          # (2C, 1)
    ex = jnp.exp(avg - jnp.max(avg, axis=0, keepdims=True))
    sm = ex * pl.reciprocal(jnp.sum(ex, axis=0, keepdims=True), approx=True)
    out = out * sm
    o_ref[0] = (out[:C] + out[C:]).astype(o_ref.dtype)


# ---------------- parameter construction ----------------
def make_params(key):
    ks = jax.random.split(key, 7)
    p = {}
    p['gn_w'] = jax.random.normal(ks[0], (C,), jnp.float32)      # GroupBatchnorm2d weight ~ randn
    p['gn_b'] = jnp.zeros((C,), jnp.float32)                     # GroupBatchnorm2d bias = zeros
    p['w_sq1'] = 0.2 * jax.random.normal(ks[1], (UPS, UP), jnp.float32)
    p['w_sq2'] = 0.2 * jax.random.normal(ks[2], (LOWS, LOW), jnp.float32)
    p['w_gwc'] = 0.2 * jax.random.normal(ks[3], (C, UPS // GROUP_SIZE, GK, GK), jnp.float32)
    p['b_gwc'] = 0.1 * jax.random.normal(ks[4], (C,), jnp.float32)
    p['w_pwc1'] = 0.2 * jax.random.normal(ks[5], (C, UPS), jnp.float32)
    # PWC2 acts on low_s, so its input dim is LOWS (UPS==LOWS with default hparams).
    p['w_pwc2'] = 0.2 * jax.random.normal(ks[6], (C - LOWS, LOWS), jnp.float32)
    return p


# ---------------- host-side constant fusion (numpy glue) ----------------
def _group_membership():
    cpg = C // GROUP_NUM
    m = np.zeros((C, C), np.float32)
    for c in range(C):
        g = c // cpg
        m[c, g * cpg:(g + 1) * cpg] = 1.0
    return jnp.asarray(m)


def _tap_masks():
    # mask[k, 0, h*W+w] = 1 iff neighbor (h+dh, w+dw) for tap k is in bounds.
    m = np.zeros((NTAP, 1, HW), np.float32)
    k = 0
    for kh in range(GK):
        for kw in range(GK):
            dh, dw = kh - GK // 2, kw - GK // 2
            for h in range(H):
                for w in range(W):
                    if 0 <= h + dh < H and 0 <= w + dw < W:
                        m[k, 0, h * W + w] = 1.0
            k += 1
    return jnp.asarray(m)


def _fused_squeeze_weight(p):
    # block-diag of squeeze1 / squeeze2 -> one (8, C) matmul producing [up_s; low_s]
    w = np.zeros((SQC, C), np.float32)
    w[:UPS, :UP] = np.asarray(p['w_sq1'])
    w[UPS:, UP:] = np.asarray(p['w_sq2'])
    return jnp.asarray(w)


def _fused_cru_weight(p):
    # Combined (2C, 80) weight applied to stacked = [masked_shift_0(sq) ... masked_shift_8(sq); sq]
    #   rows 0..C-1   : GWC taps (block-diag over groups=2) + PWC1 on the trailing up_s copy
    #   rows C..2C-1  : PWC2 on the trailing low_s copy + identity pass-through of low_s
    wout = np.zeros((2 * C, KCOMB), np.float32)
    bout = np.zeros((2 * C, 1), np.float32)
    w_gwc = np.asarray(p['w_gwc'])                 # (C, UPS//GS, 3, 3)
    out_pg = C // GROUP_SIZE
    in_pg = UPS // GROUP_SIZE
    k = 0
    for kh in range(GK):
        for kw in range(GK):
            col = k * SQC
            for g in range(GROUP_SIZE):
                wout[g * out_pg:(g + 1) * out_pg, col + g * in_pg: col + (g + 1) * in_pg] = \
                    w_gwc[g * out_pg:(g + 1) * out_pg, :, kh, kw]
            k += 1
    base = NTAP * SQC                              # 72 : start of the unshifted sq copy
    wout[:C, base:base + UPS] = np.asarray(p['w_pwc1'])
    wout[C:2 * C - LOWS, base + UPS:base + UPS + LOWS] = np.asarray(p['w_pwc2'])
    wout[2 * C - LOWS:, base + UPS:base + UPS + LOWS] = np.eye(LOWS, dtype=np.float32)
    bout[:C, 0] = np.asarray(p['b_gwc'])
    return jnp.asarray(wout), jnp.asarray(bout)


def scconv_pallas(x_nchw, params):
    n, c, h, w = x_nchw.shape
    x = x_nchw.reshape(n, c, h * w).astype(jnp.float32)
    gnw = params['gn_w'].reshape(C, 1)
    gnb = params['gn_b'].reshape(C, 1)
    wgamma = (params['gn_w'] / jnp.sum(params['gn_w'])).reshape(C, 1)   # precomputed host-side
    pmat = _group_membership()
    wsq = _fused_squeeze_weight(params)
    wcru, bcru = _fused_cru_weight(params)
    masks = _tap_masks()

    const2 = lambda arr: pl.BlockSpec(arr.shape, lambda i: (0, 0))
    const3 = lambda arr: pl.BlockSpec(arr.shape, lambda i: (0, 0, 0))

    out = pl.pallas_call(
        scconv_kernel,
        out_shape=jax.ShapeDtypeStruct((n, c, h * w), jnp.float32),
        grid_spec=pltpu.PrefetchScalarGridSpec(
            num_scalar_prefetch=0,
            grid=(n,),
            in_specs=[
                pl.BlockSpec((1, C, HW), lambda i: (i, 0, 0)),   # x, one batch element per step
                const2(gnw), const2(gnb), const2(wgamma), const2(pmat),
                const2(wsq), const2(wcru), const2(bcru),
                const3(masks),
            ],
            out_specs=pl.BlockSpec((1, C, HW), lambda i: (i, 0, 0)),
        ),
        compiler_params=pltpu.CompilerParams(dimension_semantics=("parallel",)),
    )(x, gnw, gnb, wgamma, pmat, wsq, wcru, bcru, masks)
    return out.reshape(n, c, h, w)


# ---------------- pure-JAX reference (mirrors the PyTorch forward) ----------------
def scconv_reference(x, p):
    n, c, h, w = x.shape
    xr = x.reshape(n, GROUP_NUM, -1)
    mean = xr.mean(axis=2, keepdims=True)
    std = jnp.std(xr, axis=2, keepdims=True, ddof=1)
    xn = ((xr - mean) / (std + EPS)).reshape(n, c, h, w)
    gn_w = p['gn_w'].reshape(1, c, 1, 1)
    gn_x = xn * gn_w + p['gn_b'].reshape(1, c, 1, 1)
    w_gamma = gn_w / jnp.sum(p['gn_w'])
    rew = jax.nn.sigmoid(gn_x * w_gamma)
    x1 = jnp.where(rew >= GATE_T, gn_x, 0.0)
    x2 = jnp.where(rew >= GATE_T, 0.0, gn_x)
    half = c // 2
    sr = jnp.concatenate([x1[:, :half] + x2[:, half:], x1[:, half:] + x2[:, :half]], axis=1)

    def conv(inp, wgt, groups=1, pad=0):
        return lax.conv_general_dilated(
            inp, wgt, window_strides=(1, 1), padding=((pad, pad), (pad, pad)),
            dimension_numbers=('NCHW', 'OIHW', 'NCHW'), feature_group_count=groups)

    up, low = sr[:, :UP], sr[:, UP:]
    up_s = conv(up, p['w_sq1'].reshape(UPS, UP, 1, 1))
    low_s = conv(low, p['w_sq2'].reshape(LOWS, LOW, 1, 1))
    gwc = conv(up_s, p['w_gwc'], groups=GROUP_SIZE, pad=GK // 2) + p['b_gwc'].reshape(1, c, 1, 1)
    y1 = gwc + conv(up_s, p['w_pwc1'].reshape(C, UPS, 1, 1))
    y2 = jnp.concatenate([conv(low_s, p['w_pwc2'].reshape(C - LOWS, LOWS, 1, 1)), low_s], axis=1)
    out = jnp.concatenate([y1, y2], axis=1)
    sm = jax.nn.softmax(out.mean(axis=(2, 3), keepdims=True), axis=1)
    out = out * sm
    return out[:, :c] + out[:, c:]


if __name__ == "__main__":
    key = jax.random.PRNGKey(0)
    pkey, xkey = jax.random.split(key)
    params = make_params(pkey)
    x = jax.random.normal(xkey, (N, C, H, W), jnp.float32)

    y = scconv_pallas(x, params)
    y = jax.block_until_ready(y)

    y_ref = scconv_reference(x, params)
    err = float(jnp.max(jnp.abs(y - y_ref)))
    assert y.shape == (N, C, H, W), y.shape
    assert err < 1e-2, f"max abs error vs reference: {err}"
    print("KERNEL_OK")
</pallas_src>

<mosaic_0001>
module attributes {stable_mosaic.version = 11 : i64} {
  func.func @scconv_kernel(%arg0: i32, %arg1: memref<1x16x256xf32, #tpu.memory_space<vmem>>, %arg2: memref<16x1xf32, #tpu.memory_space<vmem>>, %arg3: memref<16x1xf32, #tpu.memory_space<vmem>>, %arg4: memref<16x1xf32, #tpu.memory_space<vmem>>, %arg5: memref<16x16xf32, #tpu.memory_space<vmem>>, %arg6: memref<8x16xf32, #tpu.memory_space<vmem>>, %arg7: memref<32x80xf32, #tpu.memory_space<vmem>>, %arg8: memref<32x1xf32, #tpu.memory_space<vmem>>, %arg9: memref<9x1x256xf32, #tpu.memory_space<vmem>>, %arg10: memref<1x16x256xf32, #tpu.memory_space<vmem>>) attributes {dimension_semantics = [#tpu.dimension_semantics<parallel>], iteration_bounds = array<i64: 2>, scalar_prefetch = 0 : i64, scratch_operands = 0 : i64, tpu.core_type = #tpu.core_type<tc>, window_params = [{transform_indices = @transform_0, window_bounds = array<i64: 1, 16, 256>}, {pipeline_mode = #tpu.pipeline_mode<synchronous>, transform_indices = @transform_1, window_bounds = array<i64: 16, 1>}, {pipeline_mode = #tpu.pipeline_mode<synchronous>, transform_indices = @transform_2, window_bounds = array<i64: 16, 1>}, {pipeline_mode = #tpu.pipeline_mode<synchronous>, transform_indices = @transform_3, window_bounds = array<i64: 16, 1>}, {pipeline_mode = #tpu.pipeline_mode<synchronous>, transform_indices = @transform_4, window_bounds = array<i64: 16, 16>}, {pipeline_mode = #tpu.pipeline_mode<synchronous>, transform_indices = @transform_5, window_bounds = array<i64: 8, 16>}, {pipeline_mode = #tpu.pipeline_mode<synchronous>, transform_indices = @transform_6, window_bounds = array<i64: 32, 80>}, {pipeline_mode = #tpu.pipeline_mode<synchronous>, transform_indices = @transform_7, window_bounds = array<i64: 32, 1>}, {pipeline_mode = #tpu.pipeline_mode<synchronous>, transform_indices = @transform_8, window_bounds = array<i64: 9, 1, 256>}, {transform_indices = @transform_9, window_bounds = array<i64: 1, 16, 256>}]} {
    %c0 = arith.constant 0 : index
    %c0_0 = arith.constant 0 : index
    %c0_1 = arith.constant 0 : index
    %0 = vector.load %arg1[%c0, %c0_0, %c0_1] : memref<1x16x256xf32, #tpu.memory_space<vmem>>, vector<1x16x256xf32>
    %1 = vector.shape_cast %0 : vector<1x16x256xf32> to vector<16x256xf32>
    %c0_2 = arith.constant 0 : index
    %c0_3 = arith.constant 0 : index
    %2 = vector.load %arg2[%c0_2, %c0_3] : memref<16x1xf32, #tpu.memory_space<vmem>>, vector<16x1xf32>
    %c0_4 = arith.constant 0 : index
    %c0_5 = arith.constant 0 : index
    %3 = vector.load %arg3[%c0_4, %c0_5] : memref<16x1xf32, #tpu.memory_space<vmem>>, vector<16x1xf32>
    %c0_6 = arith.constant 0 : index
    %c0_7 = arith.constant 0 : index
    %4 = vector.load %arg4[%c0_6, %c0_7] : memref<16x1xf32, #tpu.memory_space<vmem>>, vector<16x1xf32>
    %cst = arith.constant dense<0.000000e+00> : vector<16xf32>
    %5 = vector.multi_reduction <add>, %1, %cst [1] : vector<16x256xf32> to vector<16xf32>
    %6 = vector.shape_cast %5 : vector<16xf32> to vector<16x1xf32>
    %7 = arith.mulf %1, %1 : vector<16x256xf32>
    %cst_8 = arith.constant dense<0.000000e+00> : vector<16xf32>
    %8 = vector.multi_reduction <add>, %7, %cst_8 [1] : vector<16x256xf32> to vector<16xf32>
    %9 = vector.shape_cast %8 : vector<16xf32> to vector<16x1xf32>
    %c0_9 = arith.constant 0 : index
    %c0_10 = arith.constant 0 : index
    %10 = vector.load %arg5[%c0_9, %c0_10] : memref<16x16xf32, #tpu.memory_space<vmem>>, vector<16x16xf32>
    %cst_11 = arith.constant dense<0.000000e+00> : vector<16x1xf32>
    %11 = tpu.matmul %10, %6, %cst_11 {dimension_numbers = #tpu.dot_dimension_numbers<[1], [0], [0], [1], [0, 0, 1, 1], [], []>} : vector<16x16xf32>, vector<16x1xf32>, vector<16x1xf32> -> vector<16x1xf32>
    %c0_12 = arith.constant 0 : index
    %c0_13 = arith.constant 0 : index
    %12 = vector.load %arg5[%c0_12, %c0_13] : memref<16x16xf32, #tpu.memory_space<vmem>>, vector<16x16xf32>
    %cst_14 = arith.constant dense<0.000000e+00> : vector<16x1xf32>
    %13 = tpu.matmul %12, %9, %cst_14 {dimension_numbers = #tpu.dot_dimension_numbers<[1], [0], [0], [1], [0, 0, 1, 1], [], []>} : vector<16x16xf32>, vector<16x1xf32>, vector<16x1xf32> -> vector<16x1xf32>
    %cst_15 = arith.constant 9.765625E-4 : f32
    %14 = vector.broadcast %cst_15 : f32 to vector<16x1xf32>
    %15 = arith.mulf %11, %14 : vector<16x1xf32>
    %cst_16 = arith.constant 1.024000e+03 : f32
    %16 = vector.broadcast %cst_16 : f32 to vector<16x1xf32>
    %17 = arith.mulf %16, %15 : vector<16x1xf32>
    %18 = arith.mulf %17, %15 : vector<16x1xf32>
    %19 = arith.subf %13, %18 : vector<16x1xf32>
    %cst_17 = arith.constant 1.023000e+03 : f32
    %20 = vector.broadcast %cst_17 : f32 to vector<16x1xf32>
    %21 = arith.divf %19, %20 : vector<16x1xf32>
    %cst_18 = arith.constant 0.000000e+00 : f32
    %22 = vector.broadcast %cst_18 : f32 to vector<16x1xf32>
    %23 = arith.maximumf %21, %22 : vector<16x1xf32>
    %24 = math.sqrt %23 : vector<16x1xf32>
    %cst_19 = arith.constant 1.000000e-10 : f32
    %25 = vector.broadcast %cst_19 : f32 to vector<16x1xf32>
    %26 = arith.addf %24, %25 : vector<16x1xf32>
    %cst_20 = arith.constant 1.000000e+00 : f32
    %27 = vector.broadcast %cst_20 : f32 to vector<16x1xf32>
    %28 = arith.divf %27, %26 : vector<16x1xf32>
    %29 = arith.mulf %2, %28 : vector<16x1xf32>
    %30 = arith.mulf %15, %29 : vector<16x1xf32>
    %31 = arith.subf %3, %30 : vector<16x1xf32>
    %32 = vector.broadcast %29 : vector<16x1xf32> to vector<16x256xf32>
    %33 = arith.mulf %1, %32 : vector<16x256xf32>
    %34 = vector.broadcast %31 : vector<16x1xf32> to vector<16x256xf32>
    %35 = arith.addf %33, %34 : vector<16x256xf32>
    %36 = vector.broadcast %4 : vector<16x1xf32> to vector<16x256xf32>
    %37 = arith.mulf %35, %36 : vector<16x256xf32>
    %38 = arith.negf %37 : vector<16x256xf32>
    %39 = math.exp %38 : vector<16x256xf32>
    %cst_21 = arith.constant 1.000000e+00 : f32
    %40 = vector.broadcast %cst_21 : f32 to vector<16x256xf32>
    %41 = arith.addf %40, %39 : vector<16x256xf32>
    %42 = arith.divf %40, %41 : vector<16x256xf32>
    %cst_22 = arith.constant 5.000000e-01 : f32
    %43 = vector.broadcast %cst_22 : f32 to vector<16x256xf32>
    %44 = arith.cmpf oge, %42, %43 : vector<16x256xf32>
    %cst_23 = arith.constant 0.000000e+00 : f32
    %45 = vector.broadcast %cst_23 : f32 to vector<16x256xf32>
    %46 = arith.select %44, %35, %45 : vector<16x256xi1>, vector<16x256xf32>
    %cst_24 = arith.constant 0.000000e+00 : f32
    %47 = vector.broadcast %cst_24 : f32 to vector<16x256xf32>
    %48 = arith.select %44, %47, %35 : vector<16x256xi1>, vector<16x256xf32>
    %49 = vector.extract_strided_slice %48 {offsets = [8, 0], sizes = [8, 256], strides = [1, 1]} : vector<16x256xf32> to vector<8x256xf32>
    %50 = vector.extract_strided_slice %48 {offsets = [0, 0], sizes = [8, 256], strides = [1, 1]} : vector<16x256xf32> to vector<8x256xf32>
    %51 = tpu.concatenate %49, %50 in 0 : vector<8x256xf32>, vector<8x256xf32> -> vector<16x256xf32>
    %52 = arith.addf %46, %51 : vector<16x256xf32>
    %c0_25 = arith.constant 0 : index
    %c0_26 = arith.constant 0 : index
    %53 = vector.load %arg6[%c0_25, %c0_26] : memref<8x16xf32, #tpu.memory_space<vmem>>, vector<8x16xf32>
    %cst_27 = arith.constant dense<0.000000e+00> : vector<8x256xf32>
    %54 = tpu.matmul %53, %52, %cst_27 {dimension_numbers = #tpu.dot_dimension_numbers<[1], [0], [0], [1], [0, 0, 1, 1], [], []>} : vector<8x16xf32>, vector<16x256xf32>, vector<8x256xf32> -> vector<8x256xf32>
    %c17_i32 = arith.constant 17 : i32
    %55 = tpu.dynamic_rotate %54 by %c17_i32 dim 1 : vector<8x256xf32>, i32 -> vector<8x256xf32>
    %c0_28 = arith.constant 0 : index
    %c0_29 = arith.constant 0 : index
    %c0_30 = arith.constant 0 : index
    %56 = vector.load %arg9[%c0_28, %c0_29, %c0_30] : memref<9x1x256xf32, #tpu.memory_space<vmem>>, vector<1x1x256xf32>
    %57 = vector.shape_cast %56 : vector<1x1x256xf32> to vector<1x256xf32>
    %58 = vector.broadcast %57 : vector<1x256xf32> to vector<8x256xf32>
    %59 = arith.mulf %55, %58 : vector<8x256xf32>
    %c16_i32 = arith.constant 16 : i32
    %60 = tpu.dynamic_rotate %54 by %c16_i32 dim 1 : vector<8x256xf32>, i32 -> vector<8x256xf32>
    %c1 = arith.constant 1 : index
    %c0_31 = arith.constant 0 : index
    %c0_32 = arith.constant 0 : index
    %61 = vector.load %arg9[%c1, %c0_31, %c0_32] : memref<9x1x256xf32, #tpu.memory_space<vmem>>, vector<1x1x256xf32>
    %62 = vector.shape_cast %61 : vector<1x1x256xf32> to vector<1x256xf32>
    %63 = vector.broadcast %62 : vector<1x256xf32> to vector<8x256xf32>
    %64 = arith.mulf %60, %63 : vector<8x256xf32>
    %c15_i32 = arith.constant 15 : i32
    %65 = tpu.dynamic_rotate %54 by %c15_i32 dim 1 : vector<8x256xf32>, i32 -> vector<8x256xf32>
    %c2 = arith.constant 2 : index
    %c0_33 = arith.constant 0 : index
    %c0_34 = arith.constant 0 : index
    %66 = vector.load %arg9[%c2, %c0_33, %c0_34] : memref<9x1x256xf32, #tpu.memory_space<vmem>>, vector<1x1x256xf32>
    %67 = vector.shape_cast %66 : vector<1x1x256xf32> to vector<1x256xf32>
    %68 = vector.broadcast %67 : vector<1x256xf32> to vector<8x256xf32>
    %69 = arith.mulf %65, %68 : vector<8x256xf32>
    %c1_i32 = arith.constant 1 : i32
    %70 = tpu.dynamic_rotate %54 by %c1_i32 dim 1 : vector<8x256xf32>, i32 -> vector<8x256xf32>
    %c3 = arith.constant 3 : index
    %c0_35 = arith.constant 0 : index
    %c0_36 = arith.constant 0 : index
    %71 = vector.load %arg9[%c3, %c0_35, %c0_36] : memref<9x1x256xf32, #tpu.memory_space<vmem>>, vector<1x1x256xf32>
    %72 = vector.shape_cast %71 : vector<1x1x256xf32> to vector<1x256xf32>
    %73 = vector.broadcast %72 : vector<1x256xf32> to vector<8x256xf32>
    %74 = arith.mulf %70, %73 : vector<8x256xf32>
    %c255_i32 = arith.constant 255 : i32
    %75 = tpu.dynamic_rotate %54 by %c255_i32 dim 1 : vector<8x256xf32>, i32 -> vector<8x256xf32>
    %c5 = arith.constant 5 : index
    %c0_37 = arith.constant 0 : index
    %c0_38 = arith.constant 0 : index
    %76 = vector.load %arg9[%c5, %c0_37, %c0_38] : memref<9x1x256xf32, #tpu.memory_space<vmem>>, vector<1x1x256xf32>
    %77 = vector.shape_cast %76 : vector<1x1x256xf32> to vector<1x256xf32>
    %78 = vector.broadcast %77 : vector<1x256xf32> to vector<8x256xf32>
    %79 = arith.mulf %75, %78 : vector<8x256xf32>
    %c241_i32 = arith.constant 241 : i32
    %80 = tpu.dynamic_rotate %54 by %c241_i32 dim 1 : vector<8x256xf32>, i32 -> vector<8x256xf32>
    %c6 = arith.constant 6 : index
    %c0_39 = arith.constant 0 : index
    %c0_40 = arith.constant 0 : index
    %81 = vector.load %arg9[%c6, %c0_39, %c0_40] : memref<9x1x256xf32, #tpu.memory_space<vmem>>, vector<1x1x256xf32>
    %82 = vector.shape_cast %81 : vector<1x1x256xf32> to vector<1x256xf32>
    %83 = vector.broadcast %82 : vector<1x256xf32> to vector<8x256xf32>
    %84 = arith.mulf %80, %83 : vector<8x256xf32>
    %c240_i32 = arith.constant 240 : i32
    %85 = tpu.dynamic_rotate %54 by %c240_i32 dim 1 : vector<8x256xf32>, i32 -> vector<8x256xf32>
    %c7 = arith.constant 7 : index
    %c0_41 = arith.constant 0 : index
    %c0_42 = arith.constant 0 : index
    %86 = vector.load %arg9[%c7, %c0_41, %c0_42] : memref<9x1x256xf32, #tpu.memory_space<vmem>>, vector<1x1x256xf32>
    %87 = vector.shape_cast %86 : vector<1x1x256xf32> to vector<1x256xf32>
    %88 = vector.broadcast %87 : vector<1x256xf32> to vector<8x256xf32>
    %89 = arith.mulf %85, %88 : vector<8x256xf32>
    %c239_i32 = arith.constant 239 : i32
    %90 = tpu.dynamic_rotate %54 by %c239_i32 dim 1 : vector<8x256xf32>, i32 -> vector<8x256xf32>
    %c8 = arith.constant 8 : index
    %c0_43 = arith.constant 0 : index
    %c0_44 = arith.constant 0 : index
    %91 = vector.load %arg9[%c8, %c0_43, %c0_44] : memref<9x1x256xf32, #tpu.memory_space<vmem>>, vector<1x1x256xf32>
    %92 = vector.shape_cast %91 : vector<1x1x256xf32> to vector<1x256xf32>
    %93 = vector.broadcast %92 : vector<1x256xf32> to vector<8x256xf32>
    %94 = arith.mulf %90, %93 : vector<8x256xf32>
    %95 = tpu.concatenate %59, %64, %69, %74, %54, %79, %84, %89, %94, %54 in 0 : vector<8x256xf32>, vector<8x256xf32>, vector<8x256xf32>, vector<8x256xf32>, vector<8x256xf32>, vector<8x256xf32>, vector<8x256xf32>, vector<8x256xf32>, vector<8x256xf32>, vector<8x256xf32> -> vector<80x256xf32>
    %c0_45 = arith.constant 0 : index
    %c0_46 = arith.constant 0 : index
    %96 = vector.load %arg7[%c0_45, %c0_46] : memref<32x80xf32, #tpu.memory_space<vmem>>, vector<32x80xf32>
    %cst_47 = arith.constant dense<0.000000e+00> : vector<32x256xf32>
    %97 = tpu.matmul %96, %95, %cst_47 {dimension_numbers = #tpu.dot_dimension_numbers<[1], [0], [0], [1], [0, 0, 1, 1], [], []>} : vector<32x80xf32>, vector<80x256xf32>, vector<32x256xf32> -> vector<32x256xf32>
    %c0_48 = arith.constant 0 : index
    %c0_49 = arith.constant 0 : index
    %98 = vector.load %arg8[%c0_48, %c0_49] : memref<32x1xf32, #tpu.memory_space<vmem>>, vector<32x1xf32>
    %99 = vector.broadcast %98 : vector<32x1xf32> to vector<32x256xf32>
    %100 = arith.addf %97, %99 : vector<32x256xf32>
    %cst_50 = arith.constant dense<0.000000e+00> : vector<32xf32>
    %101 = vector.multi_reduction <add>, %100, %cst_50 [1] : vector<32x256xf32> to vector<32xf32>
    %102 = vector.shape_cast %101 : vector<32xf32> to vector<32x1xf32>
    %cst_51 = arith.constant 2.560000e+02 : f32
    %103 = vector.broadcast %cst_51 : f32 to vector<32x1xf32>
    %104 = arith.divf %102, %103 : vector<32x1xf32>
    %cst_52 = arith.constant dense<0xFF800000> : vector<1xf32>
    %105 = vector.multi_reduction <maximumf>, %104, %cst_52 [0] : vector<32x1xf32> to vector<1xf32>
    %106 = vector.shape_cast %105 : vector<1xf32> to vector<1x1xf32>
    %107 = vector.broadcast %106 : vector<1x1xf32> to vector<32x1xf32>
    %108 = arith.subf %104, %107 : vector<32x1xf32>
    %109 = math.exp %108 : vector<32x1xf32>
    %cst_53 = arith.constant dense<0.000000e+00> : vector<1xf32>
    %110 = vector.multi_reduction <add>, %109, %cst_53 [0] : vector<32x1xf32> to vector<1xf32>
    %111 = vector.shape_cast %110 : vector<1xf32> to vector<1x1xf32>
    %112 = tpu.reciprocal %111 {approx = true} : vector<1x1xf32> -> vector<1x1xf32>
    %113 = vector.broadcast %112 : vector<1x1xf32> to vector<32x1xf32>
    %114 = arith.mulf %109, %113 : vector<32x1xf32>
    %115 = vector.broadcast %114 : vector<32x1xf32> to vector<32x256xf32>
    %116 = arith.mulf %100, %115 : vector<32x256xf32>
    %117 = vector.extract_strided_slice %116 {offsets = [0, 0], sizes = [16, 256], strides = [1, 1]} : vector<32x256xf32> to vector<16x256xf32>
    %118 = vector.extract_strided_slice %116 {offsets = [16, 0], sizes = [16, 256], strides = [1, 1]} : vector<32x256xf32> to vector<16x256xf32>
    %119 = arith.addf %117, %118 : vector<16x256xf32>
    %c0_54 = arith.constant 0 : index
    %c0_55 = arith.constant 0 : index
    %c0_56 = arith.constant 0 : index
    %120 = vector.load %arg10[%c0_54, %c0_55, %c0_56] : memref<1x16x256xf32, #tpu.memory_space<vmem>>, vector<1x16x256xf32>
    %121 = vector.shape_cast %120 : vector<1x16x256xf32> to vector<16x256xf32>
    %122 = vector.shape_cast %119 : vector<16x256xf32> to vector<1x16x256xf32>
    tpu.vector_store %arg10[%c0_54, %c0_55, %c0_56], %122 {strides = array<i32>} : memref<1x16x256xf32, #tpu.memory_space<vmem>>, vector<1x16x256xf32>,
    return
  }
  func.func @transform_0(%arg0: i32) -> (i32, i32, i32) {
    %c0_i32 = arith.constant 0 : i32
    %c0_i32_0 = arith.constant 0 : i32
    %c0_i32_1 = arith.constant 0 : i32
    return %arg0, %c0_i32, %c0_i32_0 : i32, i32, i32
  }
  func.func @transform_1(%arg0: i32) -> (i32, i32) {
    %c0_i32 = arith.constant 0 : i32
    %c0_i32_0 = arith.constant 0 : i32
    %c0_i32_1 = arith.constant 0 : i32
    return %c0_i32, %c0_i32_0 : i32, i32
  }
  func.func @transform_2(%arg0: i32) -> (i32, i32) {
    %c0_i32 = arith.constant 0 : i32
    %c0_i32_0 = arith.constant 0 : i32
    %c0_i32_1 = arith.constant 0 : i32
    return %c0_i32, %c0_i32_0 : i32, i32
  }
  func.func @transform_3(%arg0: i32) -> (i32, i32) {
    %c0_i32 = arith.constant 0 : i32
    %c0_i32_0 = arith.constant 0 : i32
    %c0_i32_1 = arith.constant 0 : i32
    return %c0_i32, %c0_i32_0 : i32, i32
  }
  func.func @transform_4(%arg0: i32) -> (i32, i32) {
    %c0_i32 = arith.constant 0 : i32
    %c0_i32_0 = arith.constant 0 : i32
    %c0_i32_1 = arith.constant 0 : i32
    return %c0_i32, %c0_i32_0 : i32, i32
  }
  func.func @transform_5(%arg0: i32) -> (i32, i32) {
    %c0_i32 = arith.constant 0 : i32
    %c0_i32_0 = arith.constant 0 : i32
    %c0_i32_1 = arith.constant 0 : i32
    return %c0_i32, %c0_i32_0 : i32, i32
  }
  func.func @transform_6(%arg0: i32) -> (i32, i32) {
    %c0_i32 = arith.constant 0 : i32
    %c0_i32_0 = arith.constant 0 : i32
    %c0_i32_1 = arith.constant 0 : i32
    return %c0_i32, %c0_i32_0 : i32, i32
  }
  func.func @transform_7(%arg0: i32) -> (i32, i32) {
    %c0_i32 = arith.constant 0 : i32
    %c0_i32_0 = arith.constant 0 : i32
    %c0_i32_1 = arith.constant 0 : i32
    return %c0_i32, %c0_i32_0 : i32, i32
  }
  func.func @transform_8(%arg0: i32) -> (i32, i32, i32) {
    %c0_i32 = arith.constant 0 : i32
    %c0_i32_0 = arith.constant 0 : i32
    %c0_i32_1 = arith.constant 0 : i32
    %c0_i32_2 = arith.constant 0 : i32
    return %c0_i32, %c0_i32_0, %c0_i32_1 : i32, i32, i32
  }
  func.func @transform_9(%arg0: i32) -> (i32, i32, i32) {
    %c0_i32 = arith.constant 0 : i32
    %c0_i32_0 = arith.constant 0 : i32
    %c0_i32_1 = arith.constant 0 : i32
    return %arg0, %c0_i32, %c0_i32_0 : i32, i32, i32
  }
}

</mosaic_0001>

<llo_original>
// kernel: tpu_custom_call.1
$region0: #{tpu_custom_call.1}
  #allocation0 [shape = 'u32[]', space=smem, size = 0x4, offset = 0x4, fixed_abs, tag = 'smem constant byte address 0x4 - core index']
  #allocation1 [shape = 'u32[144,128]{1,0:T(1,128)}', space=vmem, size = 0x12000, scoped, tag = 'internal scratch']
  %s0 = inlined_call_operand.vmem [shape: f32[2,16,256], index: 0, kind: input, shape index: {}]
  %s1 = inlined_call_operand.vmem [shape: f32[16,1], index: 1, kind: input, shape index: {}]
  %s2 = inlined_call_operand.vmem [shape: f32[16,1], index: 2, kind: input, shape index: {}]
  %s3 = inlined_call_operand.vmem [shape: f32[16,1], index: 3, kind: input, shape index: {}]
  %s4 = inlined_call_operand.hbm [shape: f32[16,16], index: 4, kind: input, shape index: {}]
  %s5 = inlined_call_operand.hbm [shape: f32[8,16], index: 5, kind: input, shape index: {}]
  %s6 = inlined_call_operand.vmem [shape: f32[32,80], index: 6, kind: input, shape index: {}]
  %s7 = inlined_call_operand.vmem [shape: f32[32,1], index: 7, kind: input, shape index: {}]
  %s8 = inlined_call_operand.vmem [shape: f32[9,1,256], index: 8, kind: input, shape index: {}]
  %s9 = inlined_call_operand.hbm [shape: f32[2,16,256], index: 9, kind: output, shape index: {}]
  %s10 = sld [smem:[#allocation0]]
  $region77: #{tpu_custom_call.1} parent=0
    _
  %s12 = ssub.s32 1, %s10
  %s13 = scalar_select 0, %s12, %s10
  $region1: #{tpu_custom_call.1} parent=0
    #allocation2 [shape = 'u8[8192]{0}', space=vmem, size = 0x2000, scoped, tag = 'input window, operand 4, single buffered']
    #allocation3 [shape = 's32[2]{0}', space=sflag, size = 0x8, scoped, tag = 'scoped memory for tpu_custom_call.1']
    #allocation4 [shape = 's32[2]{0}', space=sflag, size = 0x8, scoped, tag = 'scoped memory for tpu_custom_call.1']
    #allocation5 [shape = 'u8[4096]{0}', space=vmem, size = 0x1000, scoped, tag = 'input window, operand 5, single buffered']
    #allocation6 [shape = 's32[1]{0}', space=sflag, size = 0x4, scoped, tag = 'scoped memory for tpu_custom_call.1']
    #allocation7 [shape = 'u8[32768]{0}', space=vmem, size = 0x8000, scoped, tag = 'output window, operand 0']
    %14 = vsyncpa [#allocation3], 0
    %15 = vsyncpa [#allocation6], 0
    %16 = vsyncpa [#allocation4], 0
    %s17 = scalar_lea.sflag [#allocation4], 1
    %18 = vsyncpa %s17, 0
    loop: start=0, step=1, limit=4
    $region2: #{tpu_custom_call.1} parent=1 // loop_pre_header
      _
    $region3: #{tpu_custom_call.1} parent=1 // loop_header
      %s20 = sphi 0, %s24
      %p21 = scmp.ge.s32.totalorder %s20, 4
      %s30 = sphi 0, %s32
      %s33 = sphi 0, %s30
      %s34 = sphi 0, %s33
      %s50 = sphi 0, %s34
      %s54 = sphi 0, %s54
      %s56 = sphi 0, %s54
      %s57 = sphi 0, %s56
      %s71 = sphi 0, %s57
      %s75 = sphi 0, %s75
      %s77 = sphi 0, %s75
      %s78 = sphi 0, %s77
      %s92 = sphi 0, %s78
      %s96 = sphi 0, %s96
      %s98 = sphi 0, %s96
      %s99 = sphi 0, %s98
      %s113 = sphi 0, %s99
      %s117 = sphi 0, %s117
      %s119 = sphi 0, %s117
      %s120 = sphi 0, %s119
      %s134 = sphi 0, %s120
      %s138 = sphi 0, %s138
      %s140 = sphi 0, %s138
      %s141 = sphi 0, %s140
      %s155 = sphi 0, %s141
      %s159 = sphi 0, %s159
      %s161 = sphi 0, %s159
      %s162 = sphi 0, %s161
      %s176 = sphi 0, %s162
      %s180 = sphi 0, %s180
      %s182 = sphi 0, %s180
      %s183 = sphi 0, %s182
      %s197 = sphi 0, %s183
      %s201 = sphi 0, %s201
      %s203 = sphi 0, %s201
      %s204 = sphi 0, %s203
      %s218 = sphi 0, %s204
      %s224 = sphi 0, %s226
      %s227 = sphi 0, %s224
      %s228 = sphi 0, %s227
      %s244 = sphi 0, %s228
    $region4: #{tpu_custom_call.1} parent=1 // loop_header_branch
      %23 = sbr.rel (%p21) target = $region8
    $region5: #{tpu_custom_call.1} parent=1 // loop_body
      %s25 = ssub.s32 %s20, 1
      %s26 = ssub.s32 %s20, 2
      %s27 = sadd.s32 %s20, 1
      %s28 = ssub.s32 %s20, %s27
      %p29 = scmp.eq.s32.totalorder %s28, 0
      %s31 = sadd.s32 %s30, 1
      %s32 = scalar_select %p29, %s30, %s31
      %p35 = pneg %p29
      %p36 = scmp.eq.s32.totalorder %s20, 1
      %p37 = por %p35, %p36
      %p38 = scmp.ne.s32.totalorder %s30, %s33
      %p39 = scmp.eq.s32.totalorder %s20, 0
      %p40 = por %p38, %p39
      %p41 = scmp.ne.s32.totalorder %s30, %s33
      %p42 = scmp.eq.s32.totalorder %s25, 1
      %p43 = por %p41, %p42
      %p44 = scmp.ne.s32.totalorder %s33, %s34
      %p45 = scmp.eq.s32.totalorder %s25, 0
      %p46 = por %p44, %p45
      %p47 = scmp.ne.s32.totalorder %s33, %s34
      %p48 = scmp.eq.s32.totalorder %s26, 1
      %p49 = por %p47, %p48
      %p51 = scmp.ne.s32.totalorder %s34, %s50
      %p52 = scmp.eq.s32.totalorder %s26, 0
      %p53 = por %p51, %p52
      %s55 = sadd.s32 %s54, 1
      %p58 = scmp.eq.s32.totalorder %s20, 1
      %p59 = scmp.ne.s32.totalorder %s54, %s56
      %p60 = scmp.eq.s32.totalorder %s20, 0
      %p61 = por %p59, %p60
      %p62 = scmp.ne.s32.totalorder %s54, %s56
      %p63 = scmp.eq.s32.totalorder %s25, 1
      %p64 = por %p62, %p63
      %p65 = scmp.ne.s32.totalorder %s56, %s57
      %p66 = scmp.eq.s32.totalorder %s25, 0
      %p67 = por %p65, %p66
      %p68 = scmp.ne.s32.totalorder %s56, %s57
      %p69 = scmp.eq.s32.totalorder %s26, 1
      %p70 = por %p68, %p69
      %p72 = scmp.ne.s32.totalorder %s57, %s71
      %p73 = scmp.eq.s32.totalorder %s26, 0
      %p74 = por %p72, %p73
      %s76 = sadd.s32 %s75, 1
      %p79 = scmp.eq.s32.totalorder %s20, 1
      %p80 = scmp.ne.s32.totalorder %s75, %s77
      %p81 = scmp.eq.s32.totalorder %s20, 0
      %p82 = por %p80, %p81
      %p83 = scmp.ne.s32.totalorder %s75, %s77
      %p84 = scmp.eq.s32.totalorder %s25, 1
      %p85 = por %p83, %p84
      %p86 = scmp.ne.s32.totalorder %s77, %s78
      %p87 = scmp.eq.s32.totalorder %s25, 0
      %p88 = por %p86, %p87
      %p89 = scmp.ne.s32.totalorder %s77, %s78
      %p90 = scmp.eq.s32.totalorder %s26, 1
      %p91 = por %p89, %p90
      %p93 = scmp.ne.s32.totalorder %s78, %s92
      %p94 = scmp.eq.s32.totalorder %s26, 0
      %p95 = por %p93, %p94
      %s97 = sadd.s32 %s96, 1
      %p100 = scmp.eq.s32.totalorder %s20, 1
      %p101 = scmp.ne.s32.totalorder %s96, %s98
      %p102 = scmp.eq.s32.totalorder %s20, 0
      %p103 = por %p101, %p102
      %p104 = scmp.ne.s32.totalorder %s96, %s98
      %p105 = scmp.eq.s32.totalorder %s25, 1
      %p106 = por %p104, %p105
      %p107 = scmp.ne.s32.totalorder %s98, %s99
      %p108 = scmp.eq.s32.totalorder %s25, 0
      %p109 = por %p107, %p108
      %p110 = scmp.ne.s32.totalorder %s98, %s99
      %p111 = scmp.eq.s32.totalorder %s26, 1
      %p112 = por %p110, %p111
      %p114 = scmp.ne.s32.totalorder %s99, %s113
      %p115 = scmp.eq.s32.totalorder %s26, 0
      %p116 = por %p114, %p115
      %s118 = sadd.s32 %s117, 1
      %p121 = scmp.eq.s32.totalorder %s20, 1
      %p122 = scmp.ne.s32.totalorder %s117, %s119
      %p123 = scmp.eq.s32.totalorder %s20, 0
      %p124 = por %p122, %p123
      %p125 = scmp.ne.s32.totalorder %s117, %s119
      %p126 = scmp.eq.s32.totalorder %s25, 1
      %p127 = por %p125, %p126
      %p128 = scmp.ne.s32.totalorder %s119, %s120
      %p129 = scmp.eq.s32.totalorder %s25, 0
      %p130 = por %p128, %p129
      %p131 = scmp.ne.s32.totalorder %s119, %s120
      %p132 = scmp.eq.s32.totalorder %s26, 1
      %p133 = por %p131, %p132
      %p135 = scmp.ne.s32.totalorder %s120, %s134
      %p136 = scmp.eq.s32.totalorder %s26, 0
      %p137 = por %p135, %p136
      %s139 = sadd.s32 %s138, 1
      %p142 = scmp.eq.s32.totalorder %s20, 1
      %p143 = scmp.ne.s32.totalorder %s138, %s140
      %p144 = scmp.eq.s32.totalorder %s20, 0
      %p145 = por %p143, %p144
      %p146 = scmp.ne.s32.totalorder %s138, %s140
      %p147 = scmp.eq.s32.totalorder %s25, 1
      %p148 = por %p146, %p147
      %p149 = scmp.ne.s32.totalorder %s140, %s141
      %p150 = scmp.eq.s32.totalorder %s25, 0
      %p151 = por %p149, %p150
      %p152 = scmp.ne.s32.totalorder %s140, %s141
      %p153 = scmp.eq.s32.totalorder %s26, 1
      %p154 = por %p152, %p153
      %p156 = scmp.ne.s32.totalorder %s141, %s155
      %p157 = scmp.eq.s32.totalorder %s26, 0
      %p158 = por %p156, %p157
      %s160 = sadd.s32 %s159, 1
      %p163 = scmp.eq.s32.totalorder %s20, 1
      %p164 = scmp.ne.s32.totalorder %s159, %s161
      %p165 = scmp.eq.s32.totalorder %s20, 0
      %p166 = por %p164, %p165
      %p167 = scmp.ne.s32.totalorder %s159, %s161
      %p168 = scmp.eq.s32.totalorder %s25, 1
      %p169 = por %p167, %p168
      %p170 = scmp.ne.s32.totalorder %s161, %s162
      %p171 = scmp.eq.s32.totalorder %s25, 0
      %p172 = por %p170, %p171
      %p173 = scmp.ne.s32.totalorder %s161, %s162
      %p174 = scmp.eq.s32.totalorder %s26, 1
      %p175 = por %p173, %p174
      %p177 = scmp.ne.s32.totalorder %s162, %s176
      %p178 = scmp.eq.s32.totalorder %s26, 0
      %p179 = por %p177, %p178
      %s181 = sadd.s32 %s180, 1
      %p184 = scmp.eq.s32.totalorder %s20, 1
      %p185 = scmp.ne.s32.totalorder %s180, %s182
      %p186 = scmp.eq.s32.totalorder %s20, 0
      %p187 = por %p185, %p186
      %p188 = scmp.ne.s32.totalorder %s180, %s182
      %p189 = scmp.eq.s32.totalorder %s25, 1
      %p190 = por %p188, %p189
      %p191 = scmp.ne.s32.totalorder %s182, %s183
      %p192 = scmp.eq.s32.totalorder %s25, 0
      %p193 = por %p191, %p192
      %p194 = scmp.ne.s32.totalorder %s182, %s183
      %p195 = scmp.eq.s32.totalorder %s26, 1
      %p196 = por %p194, %p195
      %p198 = scmp.ne.s32.totalorder %s183, %s197
      %p199 = scmp.eq.s32.totalorder %s26, 0
      %p200 = por %p198, %p199
      %s202 = sadd.s32 %s201, 1
      %p205 = scmp.eq.s32.totalorder %s20, 1
      %p206 = scmp.ne.s32.totalorder %s201, %s203
      %p207 = scmp.eq.s32.totalorder %s20, 0
      %p208 = por %p206, %p207
      %p209 = scmp.ne.s32.totalorder %s201, %s203
      %p210 = scmp.eq.s32.totalorder %s25, 1
      %p211 = por %p209, %p210
      %p212 = scmp.ne.s32.totalorder %s203, %s204
      %p213 = scmp.eq.s32.totalorder %s25, 0
      %p214 = por %p212, %p213
      %p215 = scmp.ne.s32.totalorder %s203, %s204
      %p216 = scmp.eq.s32.totalorder %s26, 1
      %p217 = por %p215, %p216
      %p219 = scmp.ne.s32.totalorder %s204, %s218
      %p220 = scmp.eq.s32.totalorder %s26, 0
      %p221 = por %p219, %p220
      %s222 = ssub.s32 %s20, %s27
      %p223 = scmp.eq.s32.totalorder %s222, 0
      %s225 = sadd.s32 %s224, 1
      %s226 = scalar_select %p223, %s224, %s225
      %p229 = pneg %p223
      %p230 = scmp.eq.s32.totalorder %s20, 1
      %p231 = por %p229, %p230
      %p232 = scmp.ne.s32.totalorder %s224, %s227
      %p233 = scmp.eq.s32.totalorder %s20, 0
      %p234 = por %p232, %p233
      %p235 = scmp.ne.s32.totalorder %s224, %s227
      %p236 = scmp.eq.s32.totalorder %s25, 1
      %p237 = por %p235, %p236
      %p238 = scmp.ne.s32.totalorder %s227, %s228
      %p239 = scmp.eq.s32.totalorder %s25, 0
      %p240 = por %p238, %p239
      %p241 = scmp.ne.s32.totalorder %s227, %s228
      %p242 = scmp.eq.s32.totalorder %s26, 1
      %p243 = por %p241, %p242
      %p245 = scmp.ne.s32.totalorder %s228, %s244
      %p246 = scmp.eq.s32.totalorder %s26, 0
      %p247 = por %p245, %p246
      %p248 = scmp.le.s32.totalorder 1, %s20
      %p249 = scmp.lt.s32.totalorder %s20, 3
      %p250 = pnand %p248, %p249
      %p251 = pneg %p250
      // Predicated region
      $region9: #{tpu_custom_call.1} parent=5 // pred_check
        _
      $region10: #{tpu_custom_call.1} parent=5 // pred_check_branch
        %253 = sbr.rel (%p250) target = $region12
      $region11: #{tpu_custom_call.1} parent=5 // pred_region
        %s254 = ssub.s32 %s20, 1
        // Predicated region
        $region13: #{tpu_custom_call.1} parent=11 // pred_check
          %p255 = pneg %p67
        $region14: #{tpu_custom_call.1} parent=11 // pred_check_branch
          %257 = sbr.rel (%p255) target = $region16
        $region15: #{tpu_custom_call.1} parent=11 // pred_region
          _
        $region16: #{tpu_custom_call.1} parent=11 // pred_fallthru
          _
        // Predicated region
        $region17: #{tpu_custom_call.1} parent=11 // pred_check
          %p258 = pneg %p88
        $region18: #{tpu_custom_call.1} parent=11 // pred_check_branch
          %260 = sbr.rel (%p258) target = $region20
        $region19: #{tpu_custom_call.1} parent=11 // pred_region
          _
        $region20: #{tpu_custom_call.1} parent=11 // pred_fallthru
          _
        // Predicated region
        $region21: #{tpu_custom_call.1} parent=11 // pred_check
          %p261 = pneg %p109
        $region22: #{tpu_custom_call.1} parent=11 // pred_check_branch
          %263 = sbr.rel (%p261) target = $region24
        $region23: #{tpu_custom_call.1} parent=11 // pred_region
          _
        $region24: #{tpu_custom_call.1} parent=11 // pred_fallthru
          _
        // Predicated region
        $region25: #{tpu_custom_call.1} parent=11 // pred_check
          %p264 = pneg %p130
        $region26: #{tpu_custom_call.1} parent=11 // pred_check_branch
          %266 = sbr.rel (%p264) target = $region28
        $region27: #{tpu_custom_call.1} parent=11 // pred_region
          %s268 = ssub.s32 256, 256
          %269 = vsyncadd [#allocation3], %s268
          %s270 = sshll.u32 [#allocation2], 4
          %s271 = int_to_ptr.vmem [resolvable:$true] %s270
          %276 = dma.hbm_to_vmem [thread:$0]  %s4, 256, %s271, [#allocation3], 128, 128, 8
        $region28: #{tpu_custom_call.1} parent=11 // pred_fallthru
          _
        // Predicated region
        $region29: #{tpu_custom_call.1} parent=11 // pred_check
          %p277 = pneg %p151
        $region30: #{tpu_custom_call.1} parent=11 // pred_check_branch
          %279 = sbr.rel (%p277) target = $region32
        $region31: #{tpu_custom_call.1} parent=11 // pred_region
          %s281 = ssub.s32 128, 128
          %282 = vsyncadd [#allocation6], %s281
          %s284 = sshll.u32 [#allocation5], 4
          %s285 = int_to_ptr.vmem [resolvable:$true] %s284
          %287 = dma.hbm_to_vmem [thread:$0]  %s5, 128, %s285, [#allocation6]
        $region32: #{tpu_custom_call.1} parent=11 // pred_fallthru
          _
        // Predicated region
        $region33: #{tpu_custom_call.1} parent=11 // pred_check
          %p288 = pneg %p172
        $region34: #{tpu_custom_call.1} parent=11 // pred_check_branch
          %290 = sbr.rel (%p288) target = $region36
        $region35: #{tpu_custom_call.1} parent=11 // pred_region
          _
        $region36: #{tpu_custom_call.1} parent=11 // pred_fallthru
          _
        // Predicated region
        $region37: #{tpu_custom_call.1} parent=11 // pred_check
          %p291 = pneg %p193
        $region38: #{tpu_custom_call.1} parent=11 // pred_check_branch
          %293 = sbr.rel (%p291) target = $region40
        $region39: #{tpu_custom_call.1} parent=11 // pred_region
          _
        $region40: #{tpu_custom_call.1} parent=11 // pred_fallthru
          _
        // Predicated region
        $region41: #{tpu_custom_call.1} parent=11 // pred_check
          %p294 = pneg %p214
        $region42: #{tpu_custom_call.1} parent=11 // pred_check_branch
          %296 = sbr.rel (%p294) target = $region44
        $region43: #{tpu_custom_call.1} parent=11 // pred_region
          _
        $region44: #{tpu_custom_call.1} parent=11 // pred_fallthru
          _
      $region12: #{tpu_custom_call.1} parent=5 // pred_fallthru
        _
      %p297 = scmp.lt.s32.totalorder %s20, 2
      // Predicated region
      $region45: #{tpu_custom_call.1} parent=5 // pred_check
        %p298 = pneg %p297
      $region46: #{tpu_custom_call.1} parent=5 // pred_check_branch
        %300 = sbr.rel (%p298) target = $region48
      $region47: #{tpu_custom_call.1} parent=5 // pred_region
        // Predicated region
        $region49: #{tpu_custom_call.1} parent=47 // pred_check
          %p301 = pneg %p40
        $region50: #{tpu_custom_call.1} parent=47 // pred_check_branch
          %303 = sbr.rel (%p301) target = $region52
        $region51: #{tpu_custom_call.1} parent=47 // pred_region
          %p304 = scmp.lt.s32.totalorder %s20, 1
          %s305 = scalar_select %p304, %s20, 1
          %s306 = smul.addr %s305, 4
          %s307 = smul.addr %s306, 8
          %s308 = scalar_lea.vmem %s0, %s307
        $region52: #{tpu_custom_call.1} parent=47 // pred_fallthru
          _
      $region48: #{tpu_custom_call.1} parent=5 // pred_fallthru
        _
      %p309 = scmp.le.s32.totalorder 1, %s20
      %p310 = scmp.lt.s32.totalorder %s20, 3
      %p311 = pnand %p309, %p310
      %p312 = pneg %p311
      // Predicated region
      $region53: #{tpu_custom_call.1} parent=5 // pred_check
        _
      $region54: #{tpu_custom_call.1} parent=5 // pred_check_branch
        %314 = sbr.rel (%p311) target = $region56
      $region55: #{tpu_custom_call.1} parent=5 // pred_region
        %s315 = ssub.s32 %s20, 1
        // Predicated region
        $region57: #{tpu_custom_call.1} parent=55 // pred_check
          %p316 = pneg %p130
        $region58: #{tpu_custom_call.1} parent=55 // pred_check_branch
          %318 = sbr.rel (%p316) target = $region60
        $region59: #{tpu_custom_call.1} parent=55 // pred_region
          %319 = dma.done [#allocation3], 256
        $region60: #{tpu_custom_call.1} parent=55 // pred_fallthru
          _
        // Predicated region
        $region61: #{tpu_custom_call.1} parent=55 // pred_check
          %p320 = pneg %p151
        $region62: #{tpu_custom_call.1} parent=55 // pred_check_branch
          %322 = sbr.rel (%p320) target = $region64
        $region63: #{tpu_custom_call.1} parent=55 // pred_region
          %323 = dma.done [#allocation6], 128
        $region64: #{tpu_custom_call.1} parent=55 // pred_fallthru
          _
        %p324 = scmp.lt.s32.totalorder %s25, 1
        %s325 = scalar_select %p324, %s25, 1
        %s326 = smul.addr %s325, 4
        %s327 = smul.addr %s326, 8
        %s328 = scalar_lea.vmem %s0, %s327
        %p329 = pneg %p46
        %p330 = pneg %p43
        %p331 = pneg %p67
        %p332 = pneg %p64
        %p333 = pneg %p88
        %p334 = pneg %p85
        %p335 = pneg %p109
        %p336 = pneg %p106
        %p337 = pneg %p130
        %p338 = pneg %p127
        %p339 = pneg %p151
        %p340 = pneg %p148
        %p341 = pneg %p172
        %p342 = pneg %p169
        %p343 = pneg %p193
        %p344 = pneg %p190
        %p345 = pneg %p214
        %p346 = pneg %p211
        %p347 = pneg %p240
        %p348 = pneg %p237
        %s349 = sand.u32 %s227, 1
        %s350 = scalar_lea.sflag [#allocation4], %s349
        %s351 = sand.u32 %s227, 1
        %s352 = smul.addr %s351, 32
        %s353 = scalar_lea.vmem [#allocation7], %s352
        %p354 = scmp.lt.s32.totalorder %s25, 1
        %s355 = scalar_select %p354, %s25, 1
        %s356 = smul.addr %s355, 4
        %s357 = smul.addr %s356, 8
        %s358 = scalar_lea.vmem %s0, %s357
        %v359 = vld [vmem:[%s358] sm:$0xff]
        %v360 = vld [vmem:[%s358 + $0x8] sm:$0xff]
        %v361 = vld [vmem:[%s358 + $0x10] sm:$0xff]
        %v362 = vld [vmem:[%s358 + $0x18] sm:$0xff]
        %v363 = vld [vmem:[%s1] sm:$0xff]
        %v364 = vld [vmem:[%s1 + $0x8] sm:$0xff]
        %v365 = vld [vmem:[%s2] sm:$0xff]
        %v366 = vld [vmem:[%s2 + $0x8] sm:$0xff]
        %v367 = vld [vmem:[%s3] sm:$0xff]
        %v368 = vld [vmem:[%s3 + $0x8] sm:$0xff]
        %v369 = vadd.f32 %v359, %v360
        %370 = vadd.xlane.f32.xlu0 %v369
        %v371 = vpop.xlane.xlu0 %370
        %v372 = vadd.f32 %v361, %v362
        %373 = vadd.xlane.f32.xlu0 %v372
        %v374 = vpop.xlane.xlu0 %373
        %v375 = vmul.f32 %v359, %v359
        %v376 = vmul.f32 %v360, %v360
        %v377 = vmul.f32 %v361, %v361
        %v378 = vmul.f32 %v362, %v362
        %v379 = vadd.f32 %v375, %v376
        %380 = vadd.xlane.f32.xlu0 %v379
        %v381 = vpop.xlane.xlu0 %380
        %v382 = vadd.f32 %v377, %v378
        %383 = vadd.xlane.f32.xlu0 %v382
        %v384 = vpop.xlane.xlu0 %383
        %v385 = vld [vmem:[#allocation2] sm:$0xff]
        %v386 = vld [vmem:[#allocation2 + $0x8] sm:$0xff]
        %vm387 = vcmask 130048
        %v389 = vsel %vm387, %v385, 0
        %v392 = vsel %vm387, %v386, 0
        %394 = vmatprep.subr.mxu0 0.0
        %395 = vmatpush1.msra.mxu0 %v371
        %396 = vmatprep.subr.mxu0 0.0
        %397 = vmatpush1.msra.mxu0 %v374
        %398 = vmatprep.subr.mxu0 0.0
        %399 = vmatpush1.msra.mxu0 0.0
        %400 = vmatprep.subr.mxu0 0.0
        %401 = vmatpush1.msra.mxu0 0.0
        %402 = vmatprep.subr.mxu0 0.0
        %403 = vmatpush1.msra.mxu0 0.0
        %404 = vmatprep.subr.mxu0 0.0
        %405 = vmatpush1.msra.mxu0 0.0
        %406 = vmatprep.subr.mxu0 0.0
        %407 = vmatpush1.msra.mxu0 0.0
        %408 = vmatprep.subr.mxu0 0.0
        %409 = vmatpush1.msra.mxu0 0.0
        %410 = vmatprep.subr.mxu0 0.0
        %411 = vmatpush1.msra.mxu0 0.0
        %412 = vmatprep.subr.mxu0 0.0
        %413 = vmatpush1.msra.mxu0 0.0
        %414 = vmatprep.subr.mxu0 0.0
        %415 = vmatpush1.msra.mxu0 0.0
        %416 = vmatprep.subr.mxu0 0.0
        %417 = vmatpush1.msra.mxu0 0.0
        %418 = vmatprep.subr.mxu0 0.0
        %419 = vmatpush1.msra.mxu0 0.0
        %420 = vmatprep.subr.mxu0 0.0
        %421 = vmatpush1.msra.mxu0 0.0
        %422 = vmatprep.subr.mxu0 0.0
        %423 = vmatpush1.msra.mxu0 0.0
        %424 = vmatprep.subr.mxu0 0.0
        %425 = vmatpush1.msra.mxu0 0.0
        %426 = vmatprep.subr.mxu0 0.0
        %427 = vmatpush1.msra.mxu0 0.0
        %428 = vmatprep.subr.mxu0 0.0
        %429 = vmatpush1.msra.mxu0 0.0
        %430 = vmatprep.subr.mxu0 0.0
        %431 = vmatpush1.msra.mxu0 0.0
        %432 = vmatprep.subr.mxu0 0.0
        %433 = vmatpush1.msra.mxu0 0.0
        %434 = vmatprep.subr.mxu0 0.0
        %435 = vmatpush1.msra.mxu0 0.0
        %436 = vmatprep.subr.mxu0 0.0
        %437 = vmatpush1.msra.mxu0 0.0
        %438 = vmatprep.subr.mxu0 0.0
        %439 = vmatpush1.msra.mxu0 0.0
        %440 = vmatprep.subr.mxu0 0.0
        %441 = vmatpush1.msra.mxu0 0.0
        %442 = vmatprep.subr.mxu0 0.0
        %443 = vmatpush1.msra.mxu0 0.0
        %444 = vmatprep.subr.mxu0 0.0
        %445 = vmatpush1.msra.mxu0 0.0
        %446 = vmatprep.subr.mxu0 0.0
        %447 = vmatpush1.msra.mxu0 0.0
        %448 = vmatprep.subr.mxu0 0.0
        %449 = vmatpush1.msra.mxu0 0.0
        %450 = vmatprep.subr.mxu0 0.0
        %451 = vmatpush1.msra.mxu0 0.0
        %452 = vmatprep.subr.mxu0 0.0
        %453 = vmatpush1.msra.mxu0 0.0
        %454 = vmatprep.subr.mxu0 0.0
        %455 = vmatpush1.msra.mxu0 0.0
        %456 = vmatprep.subr.mxu0 0.0
        %457 = vmatpush1.msra.mxu0 0.0
        %458 = vmatprep.mubr.f32.mxu0 0.0
        %459 = vmatmul.mubr.f32.gmra.mrb[0].mxu0 %v389
        %v460 = vpop.f32.mrb[0].mxu0
        %v461 = vadd.f32 0.0, %v460
        %v462 = vpop.f32.mrb[0].mxu0
        %463 = vmatprep.mubr.f32.mxu0 0.0
        %464 = vmatmul.mubr.f32.gmra.mrb[0].mxu0 %v392
        %v465 = vpop.f32.mrb[0].mxu0
        %v466 = vadd.f32 0.0, %v465
        %v467 = vpop.f32.mrb[0].mxu0
        %468 = vdwg.mxu0
        %469 = vmatprep.subr.mxu0 0.0
        %470 = vmatpush1.msra.mxu0 %v381
        %471 = vmatprep.subr.mxu0 0.0
        %472 = vmatpush1.msra.mxu0 %v384
        %473 = vmatprep.subr.mxu0 0.0
        %474 = vmatpush1.msra.mxu0 0.0
        %475 = vmatprep.subr.mxu0 0.0
        %476 = vmatpush1.msra.mxu0 0.0
        %477 = vmatprep.subr.mxu0 0.0
        %478 = vmatpush1.msra.mxu0 0.0
        %479 = vmatprep.subr.mxu0 0.0
        %480 = vmatpush1.msra.mxu0 0.0
        %481 = vmatprep.subr.mxu0 0.0
        %482 = vmatpush1.msra.mxu0 0.0
        %483 = vmatprep.subr.mxu0 0.0
        %484 = vmatpush1.msra.mxu0 0.0
        %485 = vmatprep.subr.mxu0 0.0
        %486 = vmatpush1.msra.mxu0 0.0
        %487 = vmatprep.subr.mxu0 0.0
        %488 = vmatpush1.msra.mxu0 0.0
        %489 = vmatprep.subr.mxu0 0.0
        %490 = vmatpush1.msra.mxu0 0.0
        %491 = vmatprep.subr.mxu0 0.0
        %492 = vmatpush1.msra.mxu0 0.0
        %493 = vmatprep.subr.mxu0 0.0
        %494 = vmatpush1.msra.mxu0 0.0
        %495 = vmatprep.subr.mxu0 0.0
        %496 = vmatpush1.msra.mxu0 0.0
        %497 = vmatprep.subr.mxu0 0.0
        %498 = vmatpush1.msra.mxu0 0.0
        %499 = vmatprep.subr.mxu0 0.0
        %500 = vmatpush1.msra.mxu0 0.0
        %501 = vmatprep.subr.mxu0 0.0
        %502 = vmatpush1.msra.mxu0 0.0
        %503 = vmatprep.subr.mxu0 0.0
        %504 = vmatpush1.msra.mxu0 0.0
        %505 = vmatprep.subr.mxu0 0.0
        %506 = vmatpush1.msra.mxu0 0.0
        %507 = vmatprep.subr.mxu0 0.0
        %508 = vmatpush1.msra.mxu0 0.0
        %509 = vmatprep.subr.mxu0 0.0
        %510 = vmatpush1.msra.mxu0 0.0
        %511 = vmatprep.subr.mxu0 0.0
        %512 = vmatpush1.msra.mxu0 0.0
        %513 = vmatprep.subr.mxu0 0.0
        %514 = vmatpush1.msra.mxu0 0.0
        %515 = vmatprep.subr.mxu0 0.0
        %516 = vmatpush1.msra.mxu0 0.0
        %517 = vmatprep.subr.mxu0 0.0
        %518 = vmatpush1.msra.mxu0 0.0
        %519 = vmatprep.subr.mxu0 0.0
        %520 = vmatpush1.msra.mxu0 0.0
        %521 = vmatprep.subr.mxu0 0.0
        %522 = vmatpush1.msra.mxu0 0.0
        %523 = vmatprep.subr.mxu0 0.0
        %524 = vmatpush1.msra.mxu0 0.0
        %525 = vmatprep.subr.mxu0 0.0
        %526 = vmatpush1.msra.mxu0 0.0
        %527 = vmatprep.subr.mxu0 0.0
        %528 = vmatpush1.msra.mxu0 0.0
        %529 = vmatprep.subr.mxu0 0.0
        %530 = vmatpush1.msra.mxu0 0.0
        %531 = vmatprep.subr.mxu0 0.0
        %532 = vmatpush1.msra.mxu0 0.0
        %533 = vmatprep.mubr.f32.mxu0 0.0
        %534 = vmatmul.mubr.f32.gmra.mrb[0].mxu0 %v389
        %v535 = vpop.f32.mrb[0].mxu0
        %v536 = vadd.f32 0.0, %v535
        %v537 = vpop.f32.mrb[0].mxu0
        %538 = vmatprep.mubr.f32.mxu0 0.0
        %539 = vmatmul.mubr.f32.gmra.mrb[0].mxu0 %v392
        %v540 = vpop.f32.mrb[0].mxu0
        %v541 = vadd.f32 0.0, %v540
        %v542 = vpop.f32.mrb[0].mxu0
        %543 = vdwg.mxu0
        %v544 = vmul.f32 %v461, 0.0009765625
        %v545 = vmul.f32 %v466, 0.0009765625
        %v546 = vmul.f32 %v544, 1024.0
        %v547 = vmul.f32 %v545, 1024.0
        %v548 = vmul.f32 %v546, %v544
        %v549 = vmul.f32 %v547, %v545
        %v550 = vsub.f32 %v536, %v548
        %v551 = vsub.f32 %v541, %v549
        %v552 = vrcp.pop 1023.0
        %v553 = vmul.f32 %v550, %v552
        %v554 = vmul.f32 %v551, %v552
        %v555 = vmax.f32 %v553, 0.0
        %v556 = vmax.f32 %v554, 0.0
        %v557 = vrsqrt.pop %v555
        %v558 = vmul.f32 %v555, %v557
        %vm559 = vcmp.eq.f32.partialorder %v555, inf
        %v560 = vsel %vm559, %v555, %v558
        %vm561 = vcmp.eq.f32.partialorder %v555, 0.0
        %v562 = vand.u32 %v555, 2147483648
        %v563 = vsel %vm561, %v562, %v560
        %v564 = vrsqrt.pop %v556
        %v565 = vmul.f32 %v556, %v564
        %vm566 = vcmp.eq.f32.partialorder %v556, inf
        %v567 = vsel %vm566, %v556, %v565
        %vm568 = vcmp.eq.f32.partialorder %v556, 0.0
        %v569 = vand.u32 %v556, 2147483648
        %v570 = vsel %vm568, %v569, %v567
        %v571 = vadd.f32 %v563, 1e-10
        %v572 = vadd.f32 %v570, 1e-10
        %v573 = vrcp.pop %v571
        %v574 = vmul.f32 1.0, %v573
        %v575 = vrcp.pop %v572
        %v576 = vmul.f32 1.0, %v575
        %v577 = vmul.f32 %v363, %v574
        %v578 = vmul.f32 %v364, %v576
        %v579 = vmul.f32 %v544, %v577
        %v580 = vmul.f32 %v545, %v578
        %v581 = vsub.f32 %v365, %v579
        %v582 = vsub.f32 %v366, %v580
        %584 = vset.pattern.permute.xlu0 0
        %585 = vperm.xlu0 %584, %v577
        %v586 = vpop.permute.xlu0 %585
        %589 = vset.pattern.permute.xlu0 0
        %590 = vperm.xlu0 %589, %v578
        %v591 = vpop.permute.xlu0 %590
        %v593 = vmul.f32 %v359, %v586
        %v594 = vmul.f32 %v360, %v586
        %v595 = vmul.f32 %v361, %v591
        %v596 = vmul.f32 %v362, %v591
        %598 = vset.pattern.permute.xlu0 0
        %599 = vperm.xlu0 %598, %v581
        %v600 = vpop.permute.xlu0 %599
        %603 = vset.pattern.permute.xlu0 0
        %604 = vperm.xlu0 %603, %v582
        %v605 = vpop.permute.xlu0 %604
        %v607 = vadd.f32 %v593, %v600
        %v608 = vadd.f32 %v594, %v600
        %v609 = vadd.f32 %v595, %v605
        %v610 = vadd.f32 %v596, %v605
        %612 = vset.pattern.permute.xlu0 0
        %613 = vperm.xlu0 %612, %v367
        %v614 = vpop.permute.xlu0 %613
        %617 = vset.pattern.permute.xlu0 0
        %618 = vperm.xlu0 %617, %v368
        %v619 = vpop.permute.xlu0 %618
        %v621 = vmul.f32 %v607, %v614
        %v622 = vmul.f32 %v608, %v614
        %v623 = vmul.f32 %v609, %v619
        %v624 = vmul.f32 %v610, %v619
        %v625 = vxor.u32 %v621, 2147483648
        %v626 = vxor.u32 %v622, 2147483648
        %v627 = vxor.u32 %v623, 2147483648
        %v628 = vxor.u32 %v624, 2147483648
        %v629 = vmul.f32 %v625, 1.442695
        %v630 = vpow.pop %v629
        %v631 = vmul.f32 %v626, 1.442695
        %v632 = vpow.pop %v631
        %v633 = vmul.f32 %v627, 1.442695
        %v634 = vpow.pop %v633
        %v635 = vmul.f32 %v628, 1.442695
        %v636 = vpow.pop %v635
        %v637 = vadd.f32 %v630, 1.0
        %v638 = vadd.f32 %v632, 1.0
        %v639 = vadd.f32 %v634, 1.0
        %v640 = vadd.f32 %v636, 1.0
        %v641 = vrcp.pop %v637
        %v642 = vmul.f32 1.0, %v641
        %v643 = vrcp.pop %v638
        %v644 = vmul.f32 1.0, %v643
        %v645 = vrcp.pop %v639
        %v646 = vmul.f32 1.0, %v645
        %v647 = vrcp.pop %v640
        %v648 = vmul.f32 1.0, %v647
        %vm649 = vcmp.ge.f32.partialorder %v642, 0.5
        %vm650 = vcmp.ge.f32.partialorder %v644, 0.5
        %vm651 = vcmp.ge.f32.partialorder %v646, 0.5
        %vm652 = vcmp.ge.f32.partialorder %v648, 0.5
        %v653 = vsel %vm649, %v607, 0.0
        %v654 = vsel %vm650, %v608, 0.0
        %v655 = vsel %vm651, %v609, 0.0
        %v656 = vsel %vm652, %v610, 0.0
        %v657 = vsel %vm649, 0.0, %v607
        %v658 = vsel %vm650, 0.0, %v608
        %v659 = vsel %vm651, 0.0, %v609
        %v660 = vsel %vm652, 0.0, %v610
        %v661 = vadd.f32 %v653, %v659
        %v662 = vadd.f32 %v654, %v660
        %v663 = vadd.f32 %v655, %v657
        %v664 = vadd.f32 %v656, %v658
        %v665 = vld [vmem:[#allocation5] sm:$0xff]
        %v667 = vsel %vm387, %v665, 0
        %669 = vmatprep.subr.mxu0 %v662
        %670 = vmatpush1.msra.mxu0 %v661
        %671 = vmatprep.subr.mxu0 %v664
        %672 = vmatpush1.msra.mxu0 %v663
        %673 = vmatprep.subr.mxu0 0.0
        %674 = vmatpush1.msra.mxu0 0.0
        %675 = vmatprep.subr.mxu0 0.0
        %676 = vmatpush1.msra.mxu0 0.0
        %677 = vmatprep.subr.mxu0 0.0
        %678 = vmatpush1.msra.mxu0 0.0
        %679 = vmatprep.subr.mxu0 0.0
        %680 = vmatpush1.msra.mxu0 0.0
        %681 = vmatprep.subr.mxu0 0.0
        %682 = vmatpush1.msra.mxu0 0.0
        %683 = vmatprep.subr.mxu0 0.0
        %684 = vmatpush1.msra.mxu0 0.0
        %685 = vmatprep.subr.mxu0 0.0
        %686 = vmatpush1.msra.mxu0 0.0
        %687 = vmatprep.subr.mxu0 0.0
        %688 = vmatpush1.msra.mxu0 0.0
        %689 = vmatprep.subr.mxu0 0.0
        %690 = vmatpush1.msra.mxu0 0.0
        %691 = vmatprep.subr.mxu0 0.0
        %692 = vmatpush1.msra.mxu0 0.0
        %693 = vmatprep.subr.mxu0 0.0
        %694 = vmatpush1.msra.mxu0 0.0
        %695 = vmatprep.subr.mxu0 0.0
        %696 = vmatpush1.msra.mxu0 0.0
        %697 = vmatprep.subr.mxu0 0.0
        %698 = vmatpush1.msra.mxu0 0.0
        %699 = vmatprep.subr.mxu0 0.0
        %700 = vmatpush1.msra.mxu0 0.0
        %701 = vmatprep.subr.mxu0 0.0
        %702 = vmatpush1.msra.mxu0 0.0
        %703 = vmatprep.subr.mxu0 0.0
        %704 = vmatpush1.msra.mxu0 0.0
        %705 = vmatprep.subr.mxu0 0.0
        %706 = vmatpush1.msra.mxu0 0.0
        %707 = vmatprep.subr.mxu0 0.0
        %708 = vmatpush1.msra.mxu0 0.0
        %709 = vmatprep.subr.mxu0 0.0
        %710 = vmatpush1.msra.mxu0 0.0
        %711 = vmatprep.subr.mxu0 0.0
        %712 = vmatpush1.msra.mxu0 0.0
        %713 = vmatprep.subr.mxu0 0.0
        %714 = vmatpush1.msra.mxu0 0.0
        %715 = vmatprep.subr.mxu0 0.0
        %716 = vmatpush1.msra.mxu0 0.0
        %717 = vmatprep.subr.mxu0 0.0
        %718 = vmatpush1.msra.mxu0 0.0
        %719 = vmatprep.subr.mxu0 0.0
        %720 = vmatpush1.msra.mxu0 0.0
        %721 = vmatprep.subr.mxu0 0.0
        %722 = vmatpush1.msra.mxu0 0.0
        %723 = vmatprep.subr.mxu0 0.0
        %724 = vmatpush1.msra.mxu0 0.0
        %725 = vmatprep.subr.mxu0 0.0
        %726 = vmatpush1.msra.mxu0 0.0
        %727 = vmatprep.subr.mxu0 0.0
        %728 = vmatpush1.msra.mxu0 0.0
        %729 = vmatprep.subr.mxu0 0.0
        %730 = vmatpush1.msra.mxu0 0.0
        %731 = vmatprep.subr.mxu0 0.0
        %732 = vmatpush1.msra.mxu0 0.0
        %733 = vmatprep.mubr.f32.mxu0 0.0
        %734 = vmatmul.mubr.f32.gmra.mrb[0].mxu0 %v667
        %v735 = vpop.f32.mrb[0].mxu0
        %v736 = vadd.f32 0.0, %v735
        %v737 = vpop.f32.mrb[0].mxu0
        %v738 = vadd.f32 0.0, %v737
        %739 = vdwg.mxu0
        %740 = vrot.lane.b32.xlu0 %v736, 17
        %v741 = vpop.permute.xlu0 %740
        %742 = vrot.lane.b32.xlu0 %v738, 17
        %v743 = vpop.permute.xlu0 %742
        %v744 = vlaneseq
        %v745 = vand.u32 %v744, 127
        %vm746 = vcmp.lt.s32.totalorder %v745, 17
        %v747 = vsel %vm746, %v741, %v743
        %v748 = vsel %vm746, %v743, %v741
        %v749 = vld [vmem:[%s8] sm:$0x3]
        %v751 = vlaneseq
        %v752 = vshrl.u32 %v751, 7
        %v753 = vsub.s32 0, %v752
        %v754 = vrot.slane %v749, %v753
        %v755 = vlaneseq
        %v756 = vshrl.u32 %v755, 7
        %v757 = vsub.s32 1, %v756
        %v758 = vrot.slane %v749, %v757
        %v761 = vmul.f32 %v748, %v754
        %v762 = vmul.f32 %v747, %v758
        %763 = vrot.lane.b32.xlu0 %v736, 16
        %v764 = vpop.permute.xlu0 %763
        %765 = vrot.lane.b32.xlu0 %v738, 16
        %v766 = vpop.permute.xlu0 %765
        %vm767 = vcmp.lt.s32.totalorder %v745, 16
        %v768 = vsel %vm767, %v764, %v766
        %v769 = vsel %vm767, %v766, %v764
        %s770 = scalar_lea.vmem %s8, 2
        %v771 = vld [vmem:[%s770] sm:$0x3]
        %v773 = vlaneseq
        %v774 = vshrl.u32 %v773, 7
        %v775 = vsub.s32 0, %v774
        %v776 = vrot.slane %v771, %v775
        %v777 = vlaneseq
        %v778 = vshrl.u32 %v777, 7
        %v779 = vsub.s32 1, %v778
        %v780 = vrot.slane %v771, %v779
        %v783 = vmul.f32 %v769, %v776
        %v784 = vmul.f32 %v768, %v780
        %785 = vrot.lane.b32.xlu0 %v736, 15
        %v786 = vpop.permute.xlu0 %785
        %787 = vrot.lane.b32.xlu0 %v738, 15
        %v788 = vpop.permute.xlu0 %787
        %vm789 = vcmp.lt.s32.totalorder %v745, 15
        %v790 = vsel %vm789, %v786, %v788
        %v791 = vsel %vm789, %v788, %v786
        %s792 = scalar_lea.vmem %s8, 4
        %v793 = vld [vmem:[%s792] sm:$0x3]
        %v795 = vlaneseq
        %v796 = vshrl.u32 %v795, 7
        %v797 = vsub.s32 0, %v796
        %v798 = vrot.slane %v793, %v797
        %v799 = vlaneseq
        %v800 = vshrl.u32 %v799, 7
        %v801 = vsub.s32 1, %v800
        %v802 = vrot.slane %v793, %v801
        %v805 = vmul.f32 %v791, %v798
        %v806 = vmul.f32 %v790, %v802
        %807 = vrot.lane.b32.xlu0 %v736, 1
        %v808 = vpop.permute.xlu0 %807
        %809 = vrot.lane.b32.xlu0 %v738, 1
        %v810 = vpop.permute.xlu0 %809
        %vm811 = vcmp.lt.s32.totalorder %v745, 1
        %v812 = vsel %vm811, %v808, %v810
        %v813 = vsel %vm811, %v810, %v808
        %s814 = scalar_lea.vmem %s8, 6
        %v815 = vld [vmem:[%s814] sm:$0x3]
        %v817 = vlaneseq
        %v818 = vshrl.u32 %v817, 7
        %v819 = vsub.s32 0, %v818
        %v820 = vrot.slane %v815, %v819
        %v821 = vlaneseq
        %v822 = vshrl.u32 %v821, 7
        %v823 = vsub.s32 1, %v822
        %v824 = vrot.slane %v815, %v823
        %v827 = vmul.f32 %v813, %v820
        %v828 = vmul.f32 %v812, %v824
        %829 = vrot.lane.b32.xlu0 %v736, 127
        %v830 = vpop.permute.xlu0 %829
        %831 = vrot.lane.b32.xlu0 %v738, 127
        %v832 = vpop.permute.xlu0 %831
        %vm833 = vcmp.lt.s32.totalorder %v745, 127
        %v834 = vsel %vm833, %v830, %v832
        %v835 = vsel %vm833, %v832, %v830
        %s836 = scalar_lea.vmem %s8, 10
        %v837 = vld [vmem:[%s836] sm:$0x3]
        %v839 = vlaneseq
        %v840 = vshrl.u32 %v839, 7
        %v841 = vsub.s32 0, %v840
        %v842 = vrot.slane %v837, %v841
        %v843 = vlaneseq
        %v844 = vshrl.u32 %v843, 7
        %v845 = vsub.s32 1, %v844
        %v846 = vrot.slane %v837, %v845
        %v849 = vmul.f32 %v834, %v842
        %v850 = vmul.f32 %v835, %v846
        %851 = vrot.lane.b32.xlu0 %v736, 113
        %v852 = vpop.permute.xlu0 %851
        %853 = vrot.lane.b32.xlu0 %v738, 113
        %v854 = vpop.permute.xlu0 %853
        %vm855 = vcmp.lt.s32.totalorder %v745, 113
        %v856 = vsel %vm855, %v852, %v854
        %v857 = vsel %vm855, %v854, %v852
        %s858 = scalar_lea.vmem %s8, 12
        %v859 = vld [vmem:[%s858] sm:$0x3]
        %v861 = vlaneseq
        %v862 = vshrl.u32 %v861, 7
        %v863 = vsub.s32 0, %v862
        %v864 = vrot.slane %v859, %v863
        %v865 = vlaneseq
        %v866 = vshrl.u32 %v865, 7
        %v867 = vsub.s32 1, %v866
        %v868 = vrot.slane %v859, %v867
        %v871 = vmul.f32 %v856, %v864
        %v872 = vmul.f32 %v857, %v868
        %873 = vrot.lane.b32.xlu0 %v736, 112
        %v874 = vpop.permute.xlu0 %873
        %875 = vrot.lane.b32.xlu0 %v738, 112
        %v876 = vpop.permute.xlu0 %875
        %vm877 = vcmp.lt.s32.totalorder %v745, 112
        %v878 = vsel %vm877, %v874, %v876
        %v879 = vsel %vm877, %v876, %v874
        %s880 = scalar_lea.vmem %s8, 14
        %v881 = vld [vmem:[%s880] sm:$0x3]
        %v883 = vlaneseq
        %v884 = vshrl.u32 %v883, 7
        %v885 = vsub.s32 0, %v884
        %v886 = vrot.slane %v881, %v885
        %v887 = vlaneseq
        %v888 = vshrl.u32 %v887, 7
        %v889 = vsub.s32 1, %v888
        %v890 = vrot.slane %v881, %v889
        %v893 = vmul.f32 %v878, %v886
        %v894 = vmul.f32 %v879, %v890
        %895 = vrot.lane.b32.xlu0 %v736, 111
        %v896 = vpop.permute.xlu0 %895
        %897 = vrot.lane.b32.xlu0 %v738, 111
        %v898 = vpop.permute.xlu0 %897
        %vm899 = vcmp.lt.s32.totalorder %v745, 111
        %v900 = vsel %vm899, %v896, %v898
        %v901 = vsel %vm899, %v898, %v896
        %s902 = scalar_lea.vmem %s8, 16
        %v903 = vld [vmem:[%s902] sm:$0x3]
        %v905 = vlaneseq
        %v906 = vshrl.u32 %v905, 7
        %v907 = vsub.s32 0, %v906
        %v908 = vrot.slane %v903, %v907
        %v909 = vlaneseq
        %v910 = vshrl.u32 %v909, 7
        %v911 = vsub.s32 1, %v910
        %v912 = vrot.slane %v903, %v911
        %v915 = vmul.f32 %v900, %v908
        %v916 = vmul.f32 %v901, %v912
        %v917 = vld [vmem:[%s6] sm:$0xff]
        %v918 = vld [vmem:[%s6 + $0x8] sm:$0xff]
        %v919 = vld [vmem:[%s6 + $0x10] sm:$0xff]
        %v920 = vld [vmem:[%s6 + $0x18] sm:$0xff]
        %v921 = vld [vmem:[%s7] sm:$0xff]
        %v922 = vld [vmem:[%s7 + $0x8] sm:$0xff]
        %v923 = vld [vmem:[%s7 + $0x10] sm:$0xff]
        %v924 = vld [vmem:[%s7 + $0x18] sm:$0xff]
        %926 = vset.pattern.permute.xlu0 0
        %927 = vperm.xlu0 %926, %v921
        %v928 = vpop.permute.xlu0 %927
        %931 = vset.pattern.permute.xlu0 0
        %932 = vperm.xlu0 %931, %v922
        %v933 = vpop.permute.xlu0 %932
        %936 = vset.pattern.permute.xlu0 0
        %937 = vperm.xlu0 %936, %v923
        %v938 = vpop.permute.xlu0 %937
        %941 = vset.pattern.permute.xlu0 0
        %942 = vperm.xlu0 %941, %v924
        %v943 = vpop.permute.xlu0 %942
        %vm945 = vcmask 654336
        %v947 = vsel %vm945, %v917, 0
        %v950 = vsel %vm945, %v918, 0
        %v953 = vsel %vm945, %v919, 0
        %v956 = vsel %vm945, %v920, 0
        %958 = vmatprep.subr.mxu0 %v762
        %959 = vmatpush1.msra.mxu0 %v761
        %960 = vmatprep.subr.mxu0 %v784
        %961 = vmatpush1.msra.mxu0 %v783
        %962 = vmatprep.subr.mxu0 %v806
        %963 = vmatpush1.msra.mxu0 %v805
        %964 = vmatprep.subr.mxu0 %v828
        %965 = vmatpush1.msra.mxu0 %v827
        %966 = vmatprep.subr.mxu0 %v738
        %967 = vmatpush1.msra.mxu0 %v736
        %968 = vmatprep.subr.mxu0 %v850
        %969 = vmatpush1.msra.mxu0 %v849
        %970 = vmatprep.subr.mxu0 %v872
        %971 = vmatpush1.msra.mxu0 %v871
        %972 = vmatprep.subr.mxu0 %v894
        %973 = vmatpush1.msra.mxu0 %v893
        %974 = vmatprep.subr.mxu0 %v916
        %975 = vmatpush1.msra.mxu0 %v915
        %976 = vmatprep.subr.mxu0 %v738
        %977 = vmatpush1.msra.mxu0 %v736
        %978 = vmatprep.subr.mxu0 0.0
        %979 = vmatpush1.msra.mxu0 0.0
        %980 = vmatprep.subr.mxu0 0.0
        %981 = vmatpush1.msra.mxu0 0.0
        %982 = vmatprep.subr.mxu0 0.0
        %983 = vmatpush1.msra.mxu0 0.0
        %984 = vmatprep.subr.mxu0 0.0
        %985 = vmatpush1.msra.mxu0 0.0
        %986 = vmatprep.subr.mxu0 0.0
        %987 = vmatpush1.msra.mxu0 0.0
        %988 = vmatprep.subr.mxu0 0.0
        %989 = vmatpush1.msra.mxu0 0.0
        %990 = vmatprep.subr.mxu0 0.0
        %991 = vmatpush1.msra.mxu0 0.0
        %992 = vmatprep.subr.mxu0 0.0
        %993 = vmatpush1.msra.mxu0 0.0
        %994 = vmatprep.subr.mxu0 0.0
        %995 = vmatpush1.msra.mxu0 0.0
        %996 = vmatprep.subr.mxu0 0.0
        %997 = vmatpush1.msra.mxu0 0.0
        %998 = vmatprep.subr.mxu0 0.0
        %999 = vmatpush1.msra.mxu0 0.0
        %1000 = vmatprep.subr.mxu0 0.0
        %1001 = vmatpush1.msra.mxu0 0.0
        %1002 = vmatprep.subr.mxu0 0.0
        %1003 = vmatpush1.msra.mxu0 0.0
        %1004 = vmatprep.subr.mxu0 0.0
        %1005 = vmatpush1.msra.mxu0 0.0
        %1006 = vmatprep.subr.mxu0 0.0
        %1007 = vmatpush1.msra.mxu0 0.0
        %1008 = vmatprep.subr.mxu0 0.0
        %1009 = vmatpush1.msra.mxu0 0.0
        %1010 = vmatprep.subr.mxu0 0.0
        %1011 = vmatpush1.msra.mxu0 0.0
        %1012 = vmatprep.subr.mxu0 0.0
        %1013 = vmatpush1.msra.mxu0 0.0
        %1014 = vmatprep.subr.mxu0 0.0
        %1015 = vmatpush1.msra.mxu0 0.0
        %1016 = vmatprep.subr.mxu0 0.0
        %1017 = vmatpush1.msra.mxu0 0.0
        %1018 = vmatprep.subr.mxu0 0.0
        %1019 = vmatpush1.msra.mxu0 0.0
        %1020 = vmatprep.subr.mxu0 0.0
        %1021 = vmatpush1.msra.mxu0 0.0
        %1022 = vmatprep.mubr.f32.mxu0 0.0
        %1023 = vmatmul.mubr.f32.gmra.mrb[0].mxu0 %v947
        %v1024 = vpop.f32.mrb[0].mxu0
        %v1025 = vadd.f32 %v928, %v1024
        %v1026 = vpop.f32.mrb[0].mxu0
        %v1027 = vadd.f32 %v928, %v1026
        %1028 = vmatprep.mubr.f32.mxu0 0.0
        %1029 = vmatmul.mubr.f32.gmra.mrb[0].mxu0 %v950
        %v1030 = vpop.f32.mrb[0].mxu0
        %v1031 = vadd.f32 %v933, %v1030
        %v1032 = vpop.f32.mrb[0].mxu0
        %v1033 = vadd.f32 %v933, %v1032
        %1034 = vmatprep.mubr.f32.mxu0 0.0
        %1035 = vmatmul.mubr.f32.gmra.mrb[0].mxu0 %v953
        %v1036 = vpop.f32.mrb[0].mxu0
        %v1037 = vadd.f32 %v938, %v1036
        %v1038 = vpop.f32.mrb[0].mxu0
        %v1039 = vadd.f32 %v938, %v1038
        %1040 = vmatprep.mubr.f32.mxu0 0.0
        %1041 = vmatmul.mubr.f32.gmra.mrb[0].mxu0 %v956
        %v1042 = vpop.f32.mrb[0].mxu0
        %v1043 = vadd.f32 %v943, %v1042
        %v1044 = vpop.f32.mrb[0].mxu0
        %v1045 = vadd.f32 %v943, %v1044
        %1046 = vdwg.mxu0
        %v1047 = vadd.f32 %v1025, %v1027
        %1048 = vadd.xlane.f32.xlu0 %v1047
        %v1049 = vpop.xlane.xlu0 %1048
        %v1050 = vadd.f32 %v1031, %v1033
        %1051 = vadd.xlane.f32.xlu0 %v1050
        %v1052 = vpop.xlane.xlu0 %1051
        %v1053 = vadd.f32 %v1037, %v1039
        %1054 = vadd.xlane.f32.xlu0 %v1053
        %v1055 = vpop.xlane.xlu0 %1054
        %v1056 = vadd.f32 %v1043, %v1045
        %1057 = vadd.xlane.f32.xlu0 %v1056
        %v1058 = vpop.xlane.xlu0 %1057
        %v1059 = vrcp.pop 256.0
        %v1060 = vmul.f32 %v1049, %v1059
        %v1061 = vmul.f32 %v1052, %v1059
        %v1062 = vmul.f32 %v1055, %v1059
        %v1063 = vmul.f32 %v1058, %v1059
        %v1064 = vmax.f32 %v1060, %v1061
        %v1065 = vmax.f32 %v1062, %v1063
        %v1066 = vmax.f32 %v1064, %v1065
        %v1067 = vrot.slane %v1066, 4
        %v1068 = vmax.f32 %v1066, %v1067
        %v1069 = vrot.slane %v1068, 2
        %v1070 = vmax.f32 %v1068, %v1069
        %v1071 = vrot.slane %v1070, 1
        %v1072 = vmax.f32 %v1070, %v1071
        %v1073 = vsub.f32 %v1060, %v1072
        %v1074 = vsub.f32 %v1061, %v1072
        %v1075 = vsub.f32 %v1062, %v1072
        %v1076 = vsub.f32 %v1063, %v1072
        %v1077 = vmul.f32 %v1073, 1.442695
        %v1078 = vpow.pop %v1077
        %v1079 = vmul.f32 %v1074, 1.442695
        %v1080 = vpow.pop %v1079
        %v1081 = vmul.f32 %v1075, 1.442695
        %v1082 = vpow.pop %v1081
        %v1083 = vmul.f32 %v1076, 1.442695
        %v1084 = vpow.pop %v1083
        %v1085 = vadd.f32 %v1078, %v1080
        %v1086 = vadd.f32 %v1085, %v1082
        %v1087 = vadd.f32 %v1086, %v1084
        %v1088 = vrot.slane %v1087, 4
        %v1089 = vadd.f32 %v1087, %v1088
        %v1090 = vrot.slane %v1089, 2
        %v1091 = vadd.f32 %v1089, %v1090
        %v1092 = vrot.slane %v1091, 1
        %v1093 = vadd.f32 %v1091, %v1092
        %v1094 = vrcp.pop %v1093
        %v1095 = vmul.f32 %v1078, %v1094
        %v1096 = vmul.f32 %v1080, %v1094
        %v1097 = vmul.f32 %v1082, %v1094
        %v1098 = vmul.f32 %v1084, %v1094
        %v1099 = vmul.f32 %v1025, %v1095
        %v1100 = vmul.f32 %v1027, %v1095
        %v1101 = vmul.f32 %v1031, %v1096
        %v1102 = vmul.f32 %v1033, %v1096
        %v1103 = vmul.f32 %v1037, %v1097
        %v1104 = vmul.f32 %v1039, %v1097
        %v1105 = vmul.f32 %v1043, %v1098
        %v1106 = vmul.f32 %v1045, %v1098
        %v1107 = vadd.f32 %v1099, %v1103
        %v1108 = vadd.f32 %v1100, %v1104
        %v1109 = vadd.f32 %v1101, %v1105
        %v1110 = vadd.f32 %v1102, %v1106
        %1111 = vst [vmem:[%s353] sm:$0xff] %v1107
        %1112 = vst [vmem:[%s353 + $0x8] sm:$0xff] %v1108
        %1113 = vst [vmem:[%s353 + $0x10] sm:$0xff] %v1109
        %1114 = vst [vmem:[%s353 + $0x18] sm:$0xff] %v1110
        %s1115 = sand.u32 %s227, 1
        %s1116 = scalar_lea.sflag [#allocation4], %s1115
        %s1117 = sand.u32 %s227, 1
        %s1118 = smul.addr %s1117, 32
        %s1119 = scalar_lea.vmem [#allocation7], %s1118
        // Predicated region
        $region65: #{tpu_custom_call.1} parent=55 // pred_check
          %p1120 = pneg %p237
        $region66: #{tpu_custom_call.1} parent=55 // pred_check_branch
          %1122 = sbr.rel (%p1120) target = $region68
        $region67: #{tpu_custom_call.1} parent=55 // pred_region
          %s1124 = ssub.s32 512, 512
          %1125 = vsyncadd %s1116, %s1124
          %s1126 = smul.addr %s25, 4
          %s1127 = smul.addr %s1126, 128
          %s1128 = scalar_lea.hbm %s9, %s1127
          %s1129 = sshll.u32 %s1119, 4
          %s1130 = int_to_ptr.vmem [resolvable:$true] %s1129
          %1135 = dma.vmem_to_hbm [thread:$0]  %s1130, 512, %s1128, %s1116, 256, 256, 16
        $region68: #{tpu_custom_call.1} parent=55 // pred_fallthru
          _
      $region56: #{tpu_custom_call.1} parent=5 // pred_fallthru
        _
      %p1136 = scmp.le.s32.totalorder 2, %s20
      // Predicated region
      $region69: #{tpu_custom_call.1} parent=5 // pred_check
        %p1137 = pneg %p1136
      $region70: #{tpu_custom_call.1} parent=5 // pred_check_branch
        %1139 = sbr.rel (%p1137) target = $region72
      $region71: #{tpu_custom_call.1} parent=5 // pred_region
        %s1140 = ssub.s32 %s20, 2
        // Predicated region
        $region73: #{tpu_custom_call.1} parent=71 // pred_check
          %p1141 = pneg %p243
        $region74: #{tpu_custom_call.1} parent=71 // pred_check_branch
          %1143 = sbr.rel (%p1141) target = $region76
        $region75: #{tpu_custom_call.1} parent=71 // pred_region
          %s1144 = sand.u32 %s228, 1
          %s1145 = scalar_lea.sflag [#allocation4], %s1144
          %s1146 = sand.u32 %s228, 1
          %s1147 = smul.addr %s1146, 32
          %s1148 = scalar_lea.vmem [#allocation7], %s1147
          %1149 = dma.done %s1145, 512
        $region76: #{tpu_custom_call.1} parent=71 // pred_fallthru
          _
      $region72: #{tpu_custom_call.1} parent=5 // pred_fallthru
        _
    $region6: #{tpu_custom_call.1} parent=1 // loop_footer
      %s24 = sadd.s32 1, %s20
    $region7: #{tpu_custom_call.1} parent=1 // loop_footer_branch
      %19 = sbr.rel target = $region3
    $region8: #{tpu_custom_call.1} parent=1 // loop_exit
      _
    %1150 = vsyncpa [#allocation3], 1
    %s1151 = scalar_lea.sflag [#allocation3], 1
    %1152 = vsyncpa %s1151, 1
    %1153 = vsyncpa [#allocation6], 1
    %1154 = vsyncpa [#allocation4], 1
    %s1155 = scalar_lea.sflag [#allocation4], 1
    %1156 = vsyncpa %s1155, 1

</llo_original>
